<compile_context>
chip_gen: v5e
topology: v5e:2x2
jax: 0.10.0
libtpu: 0.0.40
codegen_flags: <defaults>
</compile_context>

<pallas_src>
import functools

import numpy as np
import jax
import jax.numpy as jnp
from jax.experimental import pallas as pl
from jax.experimental.pallas import tpu as pltpu

_EPS = 1e-5
_VMEM_LIMIT = 40 * 1024 * 1024  # <= 48 MiB so tiles also fit v7x's 64 MiB VMEM


def _round_up(x, m):
    return ((x + m - 1) // m) * m


def _choose_tm(M):
    # M-tile: biggest nice divisor (block 2nd-to-last dim must be %8 or full dim).
    if M % 8 != 0:
        return M
    for t in (512, 256, 128, 64, 32, 16, 8):
        if M % t == 0:
            return t
    return 8


def _choose_tk(Kp):
    # K-tile (Kp is already a multiple of 128).
    if Kp <= 2304:
        return Kp
    for t in (2304, 2048, 1792, 1536, 1280, 1152, 1024, 896, 768, 640, 512,
              384, 256, 128):
        if Kp % t == 0:
            return t
    return 128


# ----------------------------------------------------------------------------
# Pallas kernels
# ----------------------------------------------------------------------------
def _matmul_stats_kernel(p_ref, w_ref, z_ref, s1_ref, s2_ref):
    # grid = (M tiles [parallel], K tiles [arbitrary / reduction])
    kk = pl.program_id(1)

    @pl.when(kk == 0)
    def _():
        z_ref[...] = jnp.zeros_like(z_ref)

    z_ref[...] += jnp.dot(p_ref[...], w_ref[...],
                          preferred_element_type=jnp.float32)

    @pl.when(kk == pl.num_programs(1) - 1)
    def _():
        z = z_ref[...]
        sm = jnp.sum(z, axis=0, keepdims=True)        # per-tile sum
        sq = jnp.sum(z * z, axis=0, keepdims=True)    # per-tile sum of squares
        s1_ref[...] = jnp.broadcast_to(sm, s1_ref.shape)
        s2_ref[...] = jnp.broadcast_to(sq, s2_ref.shape)


def _bn_lrelu_kernel(z_ref, sc_ref, sh_ref, o_ref):
    cout = o_ref.shape[-1]
    y = z_ref[:, :cout] * sc_ref[...] + sh_ref[...]
    o_ref[...] = jnp.where(y > 0.0, y, 0.1 * y)


def _bn_lrelu_res_kernel(z_ref, sc_ref, sh_ref, r_ref, o_ref):
    cout = o_ref.shape[-1]
    y = z_ref[:, :cout] * sc_ref[...] + sh_ref[...]
    o_ref[...] = r_ref[...] + jnp.where(y > 0.0, y, 0.1 * y)


# ----------------------------------------------------------------------------
# im2col + bilinear upsample (PyTorch align_corners=False semantics)
# ----------------------------------------------------------------------------
def extract_patches(x, k, stride, pad):
    N, H, W, C = x.shape
    if pad:
        x = jnp.pad(x, ((0, 0), (pad, pad), (pad, pad), (0, 0)))
    Hp, Wp = H + 2 * pad, W + 2 * pad
    Ho = (Hp - k) // stride + 1
    Wo = (Wp - k) // stride + 1
    cols = []
    for kh in range(k):
        for kw in range(k):
            cols.append(x[:, kh:kh + (Ho - 1) * stride + 1:stride,
                          kw:kw + (Wo - 1) * stride + 1:stride, :])
    patches = jnp.concatenate(cols, axis=-1)          # (N, Ho, Wo, k*k*C)
    return patches.reshape(N * Ho * Wo, k * k * C), (N, Ho, Wo)


@jax.jit
def upsample_bilinear_2x(x):
    # (N, H, W, C) -> (N, 2H, 2W, C); matches nn.Upsample(2, 'bilinear',
    # align_corners=False).
    N, H, W, C = x.shape

    def coords(n_in):
        src = (jnp.arange(2 * n_in, dtype=jnp.float32) + 0.5) / 2.0 - 0.5
        src = jnp.clip(src, 0.0, float(n_in - 1))
        i0 = jnp.floor(src).astype(jnp.int32)
        i1 = jnp.minimum(i0 + 1, n_in - 1)
        return i0, i1, src - i0.astype(jnp.float32)

    h0, h1, hf = coords(H)
    w0, w1, wf = coords(W)
    rows = (jnp.take(x, h0, axis=1) * (1.0 - hf)[None, :, None, None]
            + jnp.take(x, h1, axis=1) * hf[None, :, None, None])
    out = (jnp.take(rows, w0, axis=2) * (1.0 - wf)[None, None, :, None]
           + jnp.take(rows, w1, axis=2) * wf[None, None, :, None])
    return out


# ----------------------------------------------------------------------------
# Fused Conv -> BN(batch stats) -> LeakyReLU (+ residual) layer
# ----------------------------------------------------------------------------
@functools.partial(jax.jit, static_argnames=("k", "stride", "pad", "cout"))
def _conv_layer(x, w2d, gamma, beta, residual, *, k, stride, pad, cout):
    N, H, W, Cin = x.shape
    Kpad, Cpad = w2d.shape
    xb = x.astype(jnp.bfloat16)

    if k == 1 and stride == 1 and pad == 0:
        Ho, Wo = H, W
        patches = xb.reshape(N * H * W, Cin)
    else:
        patches, (_, Ho, Wo) = extract_patches(xb, k, stride, pad)
    M = N * Ho * Wo
    Kreal = patches.shape[1]
    if Kreal < Kpad:
        patches = jnp.pad(patches, ((0, 0), (0, Kpad - Kreal)))

    tm = _choose_tm(M)
    tk = _choose_tk(Kpad)
    Mt, Kt = M // tm, Kpad // tk

    z, s1, s2 = pl.pallas_call(
        _matmul_stats_kernel,
        grid=(Mt, Kt),
        in_specs=[
            pl.BlockSpec((tm, tk), lambda i, kk: (i, kk)),
            pl.BlockSpec((tk, Cpad), lambda i, kk: (kk, 0)),
        ],
        out_specs=(
            pl.BlockSpec((tm, Cpad), lambda i, kk: (i, 0)),
            pl.BlockSpec((8, Cpad), lambda i, kk: (i, 0)),
            pl.BlockSpec((8, Cpad), lambda i, kk: (i, 0)),
        ),
        out_shape=(
            jax.ShapeDtypeStruct((M, Cpad), jnp.float32),
            jax.ShapeDtypeStruct((Mt * 8, Cpad), jnp.float32),
            jax.ShapeDtypeStruct((Mt * 8, Cpad), jnp.float32),
        ),
        compiler_params=pltpu.CompilerParams(
            dimension_semantics=("parallel", "arbitrary"),
            vmem_limit_bytes=_VMEM_LIMIT),
    )(patches, w2d)

    # Exact full-batch BN statistics (biased variance, like PyTorch train mode).
    sum_c = jnp.sum(s1.reshape(Mt, 8, Cpad)[:, 0, :cout], axis=0)
    sq_c = jnp.sum(s2.reshape(Mt, 8, Cpad)[:, 0, :cout], axis=0)
    mean = sum_c / M
    var = jnp.maximum(sq_c / M - mean * mean, 0.0)
    inv = jax.lax.rsqrt(var + _EPS)
    scale = gamma * inv
    shift = beta - mean * scale
    scale2 = scale.reshape(1, cout)
    shift2 = shift.reshape(1, cout)

    if residual is not None:
        kern = _bn_lrelu_res_kernel
        args = (z, scale2, shift2, residual.reshape(M, cout))
        in_specs = [
            pl.BlockSpec((tm, Cpad), lambda i: (i, 0)),
            pl.BlockSpec((1, cout), lambda i: (0, 0)),
            pl.BlockSpec((1, cout), lambda i: (0, 0)),
            pl.BlockSpec((tm, cout), lambda i: (i, 0)),
        ]
    else:
        kern = _bn_lrelu_kernel
        args = (z, scale2, shift2)
        in_specs = [
            pl.BlockSpec((tm, Cpad), lambda i: (i, 0)),
            pl.BlockSpec((1, cout), lambda i: (0, 0)),
            pl.BlockSpec((1, cout), lambda i: (0, 0)),
        ]

    out = pl.pallas_call(
        kern,
        grid=(Mt,),
        in_specs=in_specs,
        out_specs=pl.BlockSpec((tm, cout), lambda i: (i, 0)),
        out_shape=jax.ShapeDtypeStruct((M, cout), jnp.float32),
        compiler_params=pltpu.CompilerParams(
            dimension_semantics=("parallel",),
            vmem_limit_bytes=_VMEM_LIMIT),
    )(*args)
    return out.reshape(N, Ho, Wo, cout)


# ----------------------------------------------------------------------------
# Detection-head transform (sigmoid xy / exp wh / sigmoid iou / sigmoid cls)
# ----------------------------------------------------------------------------
def head_transform(det, num_anchors, num_classes):
    n, h, w, c = det.shape
    attrs = 5 + num_classes
    flat = det.reshape(n * h * w, c)

    def kernel(x_ref, o_ref):
        x = x_ref[...]
        o_ref[...] = jax.nn.sigmoid(x)
        for a in range(num_anchors):
            b0 = a * attrs
            o_ref[:, b0 + 2:b0 + 4] = jnp.exp(x[:, b0 + 2:b0 + 4])

    out = pl.pallas_call(
        kernel,
        out_shape=jax.ShapeDtypeStruct(flat.shape, jnp.float32),
        in_specs=[pl.BlockSpec(memory_space=pltpu.MemorySpace.VMEM)],
        out_specs=pl.BlockSpec(memory_space=pltpu.MemorySpace.VMEM),
    )(flat)
    return out.reshape(n, h * w, num_anchors, attrs)


# ----------------------------------------------------------------------------
# Parameter initialization (deterministic, synthetic weights)
# ----------------------------------------------------------------------------
def init_conv(key, cin, cout, k=3, stride=1, pad=1):
    cin, cout = int(cin), int(cout)
    k1, k2, k3 = jax.random.split(key, 3)
    fan_in = cin * k * k
    w = jax.random.normal(k1, (k, k, cin, cout), jnp.float32) / np.sqrt(fan_in)
    gamma = 1.0 + 0.1 * jax.random.normal(k2, (cout,), jnp.float32)
    beta = 0.1 * jax.random.normal(k3, (cout,), jnp.float32)
    # Conv bias omitted: train-mode BatchNorm mean subtraction cancels it exactly.
    Kreal = k * k * cin
    Kpad = _round_up(Kreal, 128)
    Cpad = _round_up(cout, 128)
    w2d = jnp.pad(w.reshape(Kreal, cout),
                  ((0, Kpad - Kreal), (0, Cpad - cout))).astype(jnp.bfloat16)
    return dict(w2d=w2d, gamma=gamma, beta=beta,
                k=k, stride=stride, pad=pad, cout=cout)


def apply_conv(p, x, residual=None):
    return _conv_layer(x, p['w2d'], p['gamma'], p['beta'], residual,
                       k=p['k'], stride=p['stride'], pad=p['pad'],
                       cout=p['cout'])


def init_residual(key, cin):
    k1, k2 = jax.random.split(key)
    return dict(c1=init_conv(k1, cin, cin // 2, 1, 1, 0),
                c2=init_conv(k2, cin // 2, cin, 3, 1, 1))


def apply_residual(p, x):
    h = apply_conv(p['c1'], x)
    return apply_conv(p['c2'], h, residual=x)   # residual add fused in kernel


def init_convs(key, inC, outC, concat=False):
    inp = inC + inC // 2 if concat else inC
    ks = jax.random.split(key, 8)
    return dict(
        c1=init_conv(ks[0], inp, inC // 2, 1, 1, 0),
        c2=init_conv(ks[1], inC // 2, inC, 3, 1, 1),
        c3=init_conv(ks[2], inC, inC // 2, 1, 1, 0),
        c4=init_conv(ks[3], inC // 2, inC, 3, 1, 1),
        c5=init_conv(ks[4], inC, inC // 2, 1, 1, 0),
        c6=init_conv(ks[5], inC // 2, inC, 3, 1, 1),
        c7=init_conv(ks[6], inC, outC, 1, 1, 0),
        cr=init_conv(ks[7], inC // 2, inC // 4, 1, 1, 0),
    )


def apply_convs(p, x):
    c1 = apply_conv(p['c1'], x)
    c2 = apply_conv(p['c2'], c1)
    c3 = apply_conv(p['c3'], c2)
    c4 = apply_conv(p['c4'], c3)
    c5 = apply_conv(p['c5'], c4)
    c6 = apply_conv(p['c6'], c5)
    out = apply_conv(p['c7'], c6)
    out_route = apply_conv(p['cr'], c5)
    return out_route, out


def init_darknet(key, anchors, num_classes):
    out_channels = (5 + num_classes) * len(anchors)
    keys = iter(jax.random.split(key, 64))
    return dict(
        conv0=init_conv(next(keys), 3, 32, 3, 1, 1),
        down1=init_conv(next(keys), 32, 64, 3, 2, 1),
        res1=[init_residual(next(keys), 64)],
        down2=init_conv(next(keys), 64, 128, 3, 2, 1),
        res2=[init_residual(next(keys), 128) for _ in range(2)],
        down3=init_conv(next(keys), 128, 256, 3, 2, 1),
        res3=[init_residual(next(keys), 256) for _ in range(8)],
        down4=init_conv(next(keys), 256, 512, 3, 2, 1),
        res4=[init_residual(next(keys), 512) for _ in range(8)],
        down5=init_conv(next(keys), 512, 1024, 3, 2, 1),
        res5=[init_residual(next(keys), 1024) for _ in range(4)],
        convs_13=init_convs(next(keys), 1024, out_channels),
        convs_26=init_convs(next(keys), 512, out_channels, concat=True),
        convs_52=init_convs(next(keys), 256, out_channels, concat=True),
    )


# ----------------------------------------------------------------------------
# Full forward
# ----------------------------------------------------------------------------
def apply_darknet(params, x_nchw, num_anchors, num_classes):
    N, _, H, W = x_nchw.shape
    assert H == W, 'Input size is not equal!'
    x = jnp.transpose(x_nchw, (0, 2, 3, 1))   # NCHW -> NHWC

    x = apply_conv(params['conv0'], x)
    f1 = apply_conv(params['down1'], x)
    for r in params['res1']:
        f1 = apply_residual(r, f1)
    f2 = apply_conv(params['down2'], f1)
    for r in params['res2']:
        f2 = apply_residual(r, f2)
    f3 = apply_conv(params['down3'], f2)
    for r in params['res3']:
        f3 = apply_residual(r, f3)
    f4 = apply_conv(params['down4'], f3)
    for r in params['res4']:
        f4 = apply_residual(r, f4)
    f5 = apply_conv(params['down5'], f4)
    for r in params['res5']:
        f5 = apply_residual(r, f5)

    route_13, det_13 = apply_convs(params['convs_13'], f5)
    route_13_up = upsample_bilinear_2x(route_13)
    route_26, det_26 = apply_convs(params['convs_26'],
                                   jnp.concatenate([route_13_up, f4], axis=-1))
    route_26_up = upsample_bilinear_2x(route_26)
    _, det_52 = apply_convs(params['convs_52'],
                            jnp.concatenate([route_26_up, f3], axis=-1))

    # Equivalent of permute(0,2,3,1).view(b,-1,na,5+nc) + sigmoid/exp transform.
    # TODO(synk): build_target-based losses / predict_transform decode omitted
    # (external functions not provided with the module).
    preds = tuple(head_transform(d, num_anchors, num_classes)
                  for d in (det_13, det_26, det_52))

    to_nchw = lambda a: jnp.transpose(a, (0, 3, 1, 2))
    return (to_nchw(det_13), to_nchw(det_26), to_nchw(det_52)), preds


# ----------------------------------------------------------------------------
# Main
# ----------------------------------------------------------------------------
if __name__ == "__main__":
    anchors = [[(10, 13), (16, 30), (33, 23)],
               [(30, 61), (62, 45), (59, 119)],
               [(116, 90), (156, 198), (373, 326)]]
    num_classes = 4
    num_anchors = len(anchors[0])

    key = jax.random.PRNGKey(0)
    kparams, kx = jax.random.split(key)
    params = init_darknet(kparams, anchors, num_classes)

    # Small synthetic input (NCHW like PyTorch). 64x64 -> detection maps 2/4/8.
    x = jax.random.normal(kx, (2, 3, 64, 64), jnp.float32)

    dets, preds = apply_darknet(params, x, num_anchors, num_classes)
    jax.block_until_ready(dets)
    jax.block_until_ready(preds)
    print("KERNEL_OK")
</pallas_src>

<mosaic_0001>
module attributes {stable_mosaic.version = 11 : i64} {
  func.func @_matmul_stats_kernel(%arg0: i32, %arg1: i32, %arg2: memref<512x128xbf16, #tpu.memory_space<vmem>>, %arg3: memref<128x128xbf16, #tpu.memory_space<vmem>>, %arg4: memref<512x128xf32, #tpu.memory_space<vmem>>, %arg5: memref<8x128xf32, #tpu.memory_space<vmem>>, %arg6: memref<8x128xf32, #tpu.memory_space<vmem>>) attributes {dimension_semantics = [#tpu.dimension_semantics<parallel>, #tpu.dimension_semantics<arbitrary>], iteration_bounds = array<i64: 16, 1>, scalar_prefetch = 0 : i64, scratch_operands = 0 : i64, tpu.core_type = #tpu.core_type<tc>, window_params = [{transform_indices = @transform_0, window_bounds = array<i64: 512, 128>}, {transform_indices = @transform_1, window_bounds = array<i64: 128, 128>}, {transform_indices = @transform_2, window_bounds = array<i64: 512, 128>}, {transform_indices = @transform_3, window_bounds = array<i64: 8, 128>}, {transform_indices = @transform_4, window_bounds = array<i64: 8, 128>}]} {
    %c0_i32 = arith.constant 0 : i32
    %0 = arith.cmpi eq, %arg1, %c0_i32 : i32
    %1 = arith.extui %0 : i1 to i32
    %c0_i32_0 = arith.constant 0 : i32
    %2 = arith.cmpi ne, %1, %c0_i32_0 : i32
    scf.if %2 {
      %cst_10 = arith.constant 0.000000e+00 : f32
      %12 = vector.broadcast %cst_10 : f32 to vector<512x128xf32>
      %c0_11 = arith.constant 0 : index
      %c0_12 = arith.constant 0 : index
      %13 = vector.load %arg4[%c0_11, %c0_12] : memref<512x128xf32, #tpu.memory_space<vmem>>, vector<512x128xf32>
      tpu.vector_store %arg4[%c0_11, %c0_12], %12 {strides = array<i32>} : memref<512x128xf32, #tpu.memory_space<vmem>>, vector<512x128xf32>,
    } else {
    }
    %c0 = arith.constant 0 : index
    %c0_1 = arith.constant 0 : index
    %3 = vector.load %arg4[%c0, %c0_1] : memref<512x128xf32, #tpu.memory_space<vmem>>, vector<512x128xf32>
    %c0_2 = arith.constant 0 : index
    %c0_3 = arith.constant 0 : index
    %4 = vector.load %arg2[%c0_2, %c0_3] : memref<512x128xbf16, #tpu.memory_space<vmem>>, vector<512x128xbf16>
    %c0_4 = arith.constant 0 : index
    %c0_5 = arith.constant 0 : index
    %5 = vector.load %arg3[%c0_4, %c0_5] : memref<128x128xbf16, #tpu.memory_space<vmem>>, vector<128x128xbf16>
    %cst = arith.constant dense<0.000000e+00> : vector<512x128xf32>
    %6 = tpu.matmul %4, %5, %cst {dimension_numbers = #tpu.dot_dimension_numbers<[1], [0], [0], [1], [0, 0, 1, 1], [], []>} : vector<512x128xbf16>, vector<128x128xbf16>, vector<512x128xf32> -> vector<512x128xf32>
    %7 = arith.addf %3, %6 : vector<512x128xf32>
    %c0_6 = arith.constant 0 : index
    %c0_7 = arith.constant 0 : index
    %8 = vector.load %arg4[%c0_6, %c0_7] : memref<512x128xf32, #tpu.memory_space<vmem>>, vector<512x128xf32>
    tpu.vector_store %arg4[%c0_6, %c0_7], %7 {strides = array<i32>} : memref<512x128xf32, #tpu.memory_space<vmem>>, vector<512x128xf32>,
    %c0_i32_8 = arith.constant 0 : i32
    %9 = arith.cmpi eq, %arg1, %c0_i32_8 : i32
    %10 = arith.extui %9 : i1 to i32
    %c0_i32_9 = arith.constant 0 : i32
    %11 = arith.cmpi ne, %10, %c0_i32_9 : i32
    scf.if %11 {
      %c0_10 = arith.constant 0 : index
      %c0_11 = arith.constant 0 : index
      %12 = vector.load %arg4[%c0_10, %c0_11] : memref<512x128xf32, #tpu.memory_space<vmem>>, vector<512x128xf32>
      %cst_12 = arith.constant dense<0.000000e+00> : vector<128xf32>
      %13 = vector.multi_reduction <add>, %12, %cst_12 [0] : vector<512x128xf32> to vector<128xf32>
      %14 = vector.shape_cast %13 : vector<128xf32> to vector<1x128xf32>
      %15 = arith.mulf %12, %12 : vector<512x128xf32>
      %cst_13 = arith.constant dense<0.000000e+00> : vector<128xf32>
      %16 = vector.multi_reduction <add>, %15, %cst_13 [0] : vector<512x128xf32> to vector<128xf32>
      %17 = vector.shape_cast %16 : vector<128xf32> to vector<1x128xf32>
      %18 = vector.shape_cast %14 : vector<1x128xf32> to vector<1x128xf32>
      %19 = vector.broadcast %18 : vector<1x128xf32> to vector<8x128xf32>
      %c0_14 = arith.constant 0 : index
      %c0_15 = arith.constant 0 : index
      %20 = vector.load %arg5[%c0_14, %c0_15] : memref<8x128xf32, #tpu.memory_space<vmem>>, vector<8x128xf32>
      tpu.vector_store %arg5[%c0_14, %c0_15], %19 {strides = array<i32>} : memref<8x128xf32, #tpu.memory_space<vmem>>, vector<8x128xf32>,
      %21 = vector.shape_cast %17 : vector<1x128xf32> to vector<1x128xf32>
      %22 = vector.broadcast %21 : vector<1x128xf32> to vector<8x128xf32>
      %c0_16 = arith.constant 0 : index
      %c0_17 = arith.constant 0 : index
      %23 = vector.load %arg6[%c0_16, %c0_17] : memref<8x128xf32, #tpu.memory_space<vmem>>, vector<8x128xf32>
      tpu.vector_store %arg6[%c0_16, %c0_17], %22 {strides = array<i32>} : memref<8x128xf32, #tpu.memory_space<vmem>>, vector<8x128xf32>,
    } else {
    }
    return
  }
  func.func @transform_0(%arg0: i32, %arg1: i32) -> (i32, i32) {
    %c0_i32 = arith.constant 0 : i32
    return %arg0, %arg1 : i32, i32
  }
  func.func @transform_1(%arg0: i32, %arg1: i32) -> (i32, i32) {
    %c0_i32 = arith.constant 0 : i32
    %c0_i32_0 = arith.constant 0 : i32
    return %arg1, %c0_i32 : i32, i32
  }
  func.func @transform_2(%arg0: i32, %arg1: i32) -> (i32, i32) {
    %c0_i32 = arith.constant 0 : i32
    %c0_i32_0 = arith.constant 0 : i32
    return %arg0, %c0_i32 : i32, i32
  }
  func.func @transform_3(%arg0: i32, %arg1: i32) -> (i32, i32) {
    %c0_i32 = arith.constant 0 : i32
    %c0_i32_0 = arith.constant 0 : i32
    return %arg0, %c0_i32 : i32, i32
  }
  func.func @transform_4(%arg0: i32, %arg1: i32) -> (i32, i32) {
    %c0_i32 = arith.constant 0 : i32
    %c0_i32_0 = arith.constant 0 : i32
    return %arg0, %c0_i32 : i32, i32
  }
}

module attributes {stable_mosaic.version = 11 : i64} {
  func.func @_bn_lrelu_kernel(%arg0: i32, %arg1: memref<512x128xf32, #tpu.memory_space<vmem>>, %arg2: memref<1x32xf32, #tpu.memory_space<vmem>>, %arg3: memref<1x32xf32, #tpu.memory_space<vmem>>, %arg4: memref<512x32xf32, #tpu.memory_space<vmem>>) attributes {dimension_semantics = [#tpu.dimension_semantics<parallel>], iteration_bounds = array<i64: 16>, scalar_prefetch = 0 : i64, scratch_operands = 0 : i64, tpu.core_type = #tpu.core_type<tc>, window_params = [{transform_indices = @transform_0, window_bounds = array<i64: 512, 128>}, {pipeline_mode = #tpu.pipeline_mode<synchronous>, transform_indices = @transform_1, window_bounds = array<i64: 1, 32>}, {pipeline_mode = #tpu.pipeline_mode<synchronous>, transform_indices = @transform_2, window_bounds = array<i64: 1, 32>}, {transform_indices = @transform_3, window_bounds = array<i64: 512, 32>}]} {
    %c0 = arith.constant 0 : index
    %c0_0 = arith.constant 0 : index
    %0 = vector.load %arg1[%c0, %c0_0] : memref<512x128xf32, #tpu.memory_space<vmem>>, vector<512x32xf32>
    %c0_1 = arith.constant 0 : index
    %c0_2 = arith.constant 0 : index
    %1 = vector.load %arg2[%c0_1, %c0_2] : memref<1x32xf32, #tpu.memory_space<vmem>>, vector<1x32xf32>
    %2 = vector.broadcast %1 : vector<1x32xf32> to vector<512x32xf32>
    %3 = arith.mulf %0, %2 : vector<512x32xf32>
    %c0_3 = arith.constant 0 : index
    %c0_4 = arith.constant 0 : index
    %4 = vector.load %arg3[%c0_3, %c0_4] : memref<1x32xf32, #tpu.memory_space<vmem>>, vector<1x32xf32>
    %5 = vector.broadcast %4 : vector<1x32xf32> to vector<512x32xf32>
    %6 = arith.addf %3, %5 : vector<512x32xf32>
    %cst = arith.constant 0.000000e+00 : f32
    %7 = vector.broadcast %cst : f32 to vector<512x32xf32>
    %8 = arith.cmpf ogt, %6, %7 : vector<512x32xf32>
    %cst_5 = arith.constant 1.000000e-01 : f32
    %9 = vector.broadcast %cst_5 : f32 to vector<512x32xf32>
    %10 = arith.mulf %9, %6 : vector<512x32xf32>
    %11 = arith.select %8, %6, %10 : vector<512x32xi1>, vector<512x32xf32>
    %c0_6 = arith.constant 0 : index
    %c0_7 = arith.constant 0 : index
    %12 = vector.load %arg4[%c0_6, %c0_7] : memref<512x32xf32, #tpu.memory_space<vmem>>, vector<512x32xf32>
    tpu.vector_store %arg4[%c0_6, %c0_7], %11 {strides = array<i32>} : memref<512x32xf32, #tpu.memory_space<vmem>>, vector<512x32xf32>,
    return
  }
  func.func @transform_0(%arg0: i32) -> (i32, i32) {
    %c0_i32 = arith.constant 0 : i32
    %c0_i32_0 = arith.constant 0 : i32
    return %arg0, %c0_i32 : i32, i32
  }
  func.func @transform_1(%arg0: i32) -> (i32, i32) {
    %c0_i32 = arith.constant 0 : i32
    %c0_i32_0 = arith.constant 0 : i32
    %c0_i32_1 = arith.constant 0 : i32
    return %c0_i32, %c0_i32_0 : i32, i32
  }
  func.func @transform_2(%arg0: i32) -> (i32, i32) {
    %c0_i32 = arith.constant 0 : i32
    %c0_i32_0 = arith.constant 0 : i32
    %c0_i32_1 = arith.constant 0 : i32
    return %c0_i32, %c0_i32_0 : i32, i32
  }
  func.func @transform_3(%arg0: i32) -> (i32, i32) {
    %c0_i32 = arith.constant 0 : i32
    %c0_i32_0 = arith.constant 0 : i32
    return %arg0, %c0_i32 : i32, i32
  }
}

</mosaic_0001>

<llo_original>
// kernel: _conv_layer.2
$region0: #{_conv_layer.2}
  #allocation0 [shape = 'u32[]', space=smem, size = 0x4, offset = 0x4, fixed_abs, tag = 'smem constant byte address 0x4 - core index']
  #allocation1 [shape = 'u32[72,128]{1,0:T(1,128)}', space=vmem, size = 0x9000, scoped, tag = 'internal scratch']
  %s0 = inlined_call_operand.vmem [shape: bf16[8192,128], index: 0, kind: input, shape index: {}]
  %s1 = inlined_call_operand.vmem [shape: bf16[128,128], index: 1, kind: input, shape index: {}]
  %s2 = inlined_call_operand.vmem [shape: f32[8192,128], index: 2, kind: output, shape index: {0}]
  %s3 = inlined_call_operand.vmem [shape: f32[128,128], index: 3, kind: output, shape index: {1}]
  %s4 = inlined_call_operand.vmem [shape: f32[128,128], index: 4, kind: output, shape index: {2}]
  %5 = xla_tuple %s2, %s3, %s4
  %s6 = sld [smem:[#allocation0]]
  $region65: #{_conv_layer.2} parent=0
    _
  %s8 = ssub.s32 1, %s6
  %s9 = scalar_select 0, %s8, %s6
  loop: start=0, step=1, limit=18
  $region2: #{_conv_layer.2} parent=0 // loop_pre_header
    _
  $region3: #{_conv_layer.2} parent=0 // loop_header
    %s11 = sphi 0, %s15
    %p12 = scmp.ge.s32.totalorder %s11, 18
    %s18 = sphi 0, %s30
    %s19 = sphi 0, %s26
    %s20 = sphi 0, %s18
    %s21 = sphi 0, %s19
    %s22 = sphi 0, %s20
    %s23 = sphi 0, %s21
    %s35 = sphi 0, %s37
    %s38 = sphi 0, %s35
    %s39 = sphi 0, %s38
    %s55 = sphi 0, %s39
    %s61 = sphi 0, %s63
    %s64 = sphi 0, %s61
    %s65 = sphi 0, %s64
    %s81 = sphi 0, %s65
    %s87 = sphi 0, %s89
    %s90 = sphi 0, %s87
    %s91 = sphi 0, %s90
    %s107 = sphi 0, %s91
    %s113 = sphi 0, %s115
    %s116 = sphi 0, %s113
    %s117 = sphi 0, %s116
    %s133 = sphi 0, %s117
    %s139 = sphi 0, %s141
    %s142 = sphi 0, %s139
    %s143 = sphi 0, %s142
    %s159 = sphi 0, %s143
  $region4: #{_conv_layer.2} parent=0 // loop_header_branch
    %14 = sbr.rel (%p12) target = $region8
  $region5: #{_conv_layer.2} parent=0 // loop_body
    %s16 = ssub.s32 %s11, 1
    %s17 = ssub.s32 %s11, 2
    %s24 = sadd.s32 1, %s19
    %p25 = scmp.ge.s32.totalorder %s24, 1
    %s26 = scalar_select %p25, 0, %s24
    %s27 = sadd.s32 1, %s18
    %s28 = scalar_select %p25, %s27, %s18
    %p29 = scmp.ge.s32.totalorder %s28, 16
    %s30 = scalar_select %p29, 0, %s28
    %s31 = ssub.s32 %s18, %s30
    %s32 = ssub.s32 %s19, %s26
    %s33 = sor.u32 %s31, %s32
    %p34 = scmp.eq.s32.totalorder %s33, 0
    %s36 = sadd.s32 %s35, 1
    %s37 = scalar_select %p34, %s35, %s36
    %p40 = pneg %p34
    %p41 = scmp.eq.s32.totalorder %s11, 15
    %p42 = por %p40, %p41
    %p43 = scmp.ne.s32.totalorder %s35, %s38
    %p44 = scmp.eq.s32.totalorder %s11, 0
    %p45 = por %p43, %p44
    %p46 = scmp.ne.s32.totalorder %s35, %s38
    %p47 = scmp.eq.s32.totalorder %s16, 15
    %p48 = por %p46, %p47
    %p49 = scmp.ne.s32.totalorder %s38, %s39
    %p50 = scmp.eq.s32.totalorder %s16, 0
    %p51 = por %p49, %p50
    %p52 = scmp.ne.s32.totalorder %s38, %s39
    %p53 = scmp.eq.s32.totalorder %s17, 15
    %p54 = por %p52, %p53
    %p56 = scmp.ne.s32.totalorder %s39, %s55
    %p57 = scmp.eq.s32.totalorder %s17, 0
    %p58 = por %p56, %p57
    %s59 = ssub.s32 %s19, %s26
    %p60 = scmp.eq.s32.totalorder %s59, 0
    %s62 = sadd.s32 %s61, 1
    %s63 = scalar_select %p60, %s61, %s62
    %p66 = pneg %p60
    %p67 = scmp.eq.s32.totalorder %s11, 15
    %p68 = por %p66, %p67
    %p69 = scmp.ne.s32.totalorder %s61, %s64
    %p70 = scmp.eq.s32.totalorder %s11, 0
    %p71 = por %p69, %p70
    %p72 = scmp.ne.s32.totalorder %s61, %s64
    %p73 = scmp.eq.s32.totalorder %s16, 15
    %p74 = por %p72, %p73
    %p75 = scmp.ne.s32.totalorder %s64, %s65
    %p76 = scmp.eq.s32.totalorder %s16, 0
    %p77 = por %p75, %p76
    %p78 = scmp.ne.s32.totalorder %s64, %s65
    %p79 = scmp.eq.s32.totalorder %s17, 15
    %p80 = por %p78, %p79
    %p82 = scmp.ne.s32.totalorder %s65, %s81
    %p83 = scmp.eq.s32.totalorder %s17, 0
    %p84 = por %p82, %p83
    %s85 = ssub.s32 %s18, %s30
    %p86 = scmp.eq.s32.totalorder %s85, 0
    %s88 = sadd.s32 %s87, 1
    %s89 = scalar_select %p86, %s87, %s88
    %p92 = pneg %p86
    %p93 = scmp.eq.s32.totalorder %s11, 15
    %p94 = por %p92, %p93
    %p95 = scmp.ne.s32.totalorder %s87, %s90
    %p96 = scmp.eq.s32.totalorder %s11, 0
    %p97 = por %p95, %p96
    %p98 = scmp.ne.s32.totalorder %s87, %s90
    %p99 = scmp.eq.s32.totalorder %s16, 15
    %p100 = por %p98, %p99
    %p101 = scmp.ne.s32.totalorder %s90, %s91
    %p102 = scmp.eq.s32.totalorder %s16, 0
    %p103 = por %p101, %p102
    %p104 = scmp.ne.s32.totalorder %s90, %s91
    %p105 = scmp.eq.s32.totalorder %s17, 15
    %p106 = por %p104, %p105
    %p108 = scmp.ne.s32.totalorder %s91, %s107
    %p109 = scmp.eq.s32.totalorder %s17, 0
    %p110 = por %p108, %p109
    %s111 = ssub.s32 %s18, %s30
    %p112 = scmp.eq.s32.totalorder %s111, 0
    %s114 = sadd.s32 %s113, 1
    %s115 = scalar_select %p112, %s113, %s114
    %p118 = pneg %p112
    %p119 = scmp.eq.s32.totalorder %s11, 15
    %p120 = por %p118, %p119
    %p121 = scmp.ne.s32.totalorder %s113, %s116
    %p122 = scmp.eq.s32.totalorder %s11, 0
    %p123 = por %p121, %p122
    %p124 = scmp.ne.s32.totalorder %s113, %s116
    %p125 = scmp.eq.s32.totalorder %s16, 15
    %p126 = por %p124, %p125
    %p127 = scmp.ne.s32.totalorder %s116, %s117
    %p128 = scmp.eq.s32.totalorder %s16, 0
    %p129 = por %p127, %p128
    %p130 = scmp.ne.s32.totalorder %s116, %s117
    %p131 = scmp.eq.s32.totalorder %s17, 15
    %p132 = por %p130, %p131
    %p134 = scmp.ne.s32.totalorder %s117, %s133
    %p135 = scmp.eq.s32.totalorder %s17, 0
    %p136 = por %p134, %p135
    %s137 = ssub.s32 %s18, %s30
    %p138 = scmp.eq.s32.totalorder %s137, 0
    %s140 = sadd.s32 %s139, 1
    %s141 = scalar_select %p138, %s139, %s140
    %p144 = pneg %p138
    %p145 = scmp.eq.s32.totalorder %s11, 15
    %p146 = por %p144, %p145
    %p147 = scmp.ne.s32.totalorder %s139, %s142
    %p148 = scmp.eq.s32.totalorder %s11, 0
    %p149 = por %p147, %p148
    %p150 = scmp.ne.s32.totalorder %s139, %s142
    %p151 = scmp.eq.s32.totalorder %s16, 15
    %p152 = por %p150, %p151
    %p153 = scmp.ne.s32.totalorder %s142, %s143
    %p154 = scmp.eq.s32.totalorder %s16, 0
    %p155 = por %p153, %p154
    %p156 = scmp.ne.s32.totalorder %s142, %s143
    %p157 = scmp.eq.s32.totalorder %s17, 15
    %p158 = por %p156, %p157
    %p160 = scmp.ne.s32.totalorder %s143, %s159
    %p161 = scmp.eq.s32.totalorder %s17, 0
    %p162 = por %p160, %p161
    %p163 = scmp.le.s32.totalorder 1, %s11
    %p164 = scmp.lt.s32.totalorder %s11, 17
    %p165 = pnand %p163, %p164
    %p166 = pneg %p165
    // Predicated region
    $region9: #{_conv_layer.2} parent=5 // pred_check
      _
    $region10: #{_conv_layer.2} parent=5 // pred_check_branch
      %168 = sbr.rel (%p165) target = $region12
    $region11: #{_conv_layer.2} parent=5 // pred_region
      %s169 = ssub.s32 %s11, 1
      // Predicated region
      $region13: #{_conv_layer.2} parent=11 // pred_check
        %p170 = pneg %p77
      $region14: #{_conv_layer.2} parent=11 // pred_check_branch
        %172 = sbr.rel (%p170) target = $region16
      $region15: #{_conv_layer.2} parent=11 // pred_region
        %s173 = smul.u32 16, %s21
        %p174 = scmp.lt.s32.totalorder %s173, 15
        %s175 = scalar_select %p174, %s173, 15
        %s176 = smul.addr %s175, 4
        %s177 = scalar_lea.vmem %s1, %s176
        %s178 = smul.u32 16, %s21
      $region16: #{_conv_layer.2} parent=11 // pred_fallthru
        _
    $region12: #{_conv_layer.2} parent=5 // pred_fallthru
      _
    %p179 = scmp.lt.s32.totalorder %s11, 16
    // Predicated region
    $region17: #{_conv_layer.2} parent=5 // pred_check
      %p180 = pneg %p179
    $region18: #{_conv_layer.2} parent=5 // pred_check_branch
      %182 = sbr.rel (%p180) target = $region20
    $region19: #{_conv_layer.2} parent=5 // pred_region
      // Predicated region
      $region21: #{_conv_layer.2} parent=19 // pred_check
        %p183 = pneg %p45
      $region22: #{_conv_layer.2} parent=19 // pred_check_branch
        %185 = sbr.rel (%p183) target = $region24
      $region23: #{_conv_layer.2} parent=19 // pred_region
        %s186 = smul.u32 64, %s18
        %p187 = scmp.lt.s32.totalorder %s186, 1023
        %s188 = scalar_select %p187, %s186, 1023
        %p189 = scmp.lt.s32.totalorder %s19, 0
        %s190 = scalar_select %p189, %s19, 0
        %s191 = sadd.s32 %s190, %s188
        %s192 = smul.addr %s191, 4
        %s193 = scalar_lea.vmem %s0, %s192
        %s194 = smul.u32 64, %s18
      $region24: #{_conv_layer.2} parent=19 // pred_fallthru
        _
    $region20: #{_conv_layer.2} parent=5 // pred_fallthru
      _
    %p195 = scmp.le.s32.totalorder 1, %s11
    %p196 = scmp.lt.s32.totalorder %s11, 17
    %p197 = pnand %p195, %p196
    %p198 = pneg %p197
    // Predicated region
    $region25: #{_conv_layer.2} parent=5 // pred_check
      _
    $region26: #{_conv_layer.2} parent=5 // pred_check_branch
      %200 = sbr.rel (%p197) target = $region28
    $region27: #{_conv_layer.2} parent=5 // pred_region
      %s201 = ssub.s32 %s11, 1
      %s202 = smul.u32 64, %s20
      %p203 = scmp.lt.s32.totalorder %s202, 1023
      %s204 = scalar_select %p203, %s202, 1023
      %p205 = scmp.lt.s32.totalorder %s21, 0
      %s206 = scalar_select %p205, %s21, 0
      %s207 = sadd.s32 %s206, %s204
      %s208 = smul.addr %s207, 4
      %s209 = scalar_lea.vmem %s0, %s208
      %p210 = pneg %p51
      %p211 = pneg %p48
      %s212 = smul.u32 16, %s21
      %p213 = scmp.lt.s32.totalorder %s212, 15
      %s214 = scalar_select %p213, %s212, 15
      %s215 = smul.addr %s214, 4
      %s216 = scalar_lea.vmem %s1, %s215
      %p217 = pneg %p77
      %p218 = pneg %p74
      %p219 = pneg %p103
      %p220 = pneg %p100
      %s221 = smul.u32 64, %s20
      %p222 = scmp.lt.s32.totalorder %s221, 1023
      %s223 = scalar_select %p222, %s221, 1023
      %s224 = smul.addr %s223, 8
      %s225 = scalar_lea.vmem %s2, %s224
      %p226 = pneg %p129
      %p227 = pneg %p126
      %p228 = scmp.lt.s32.totalorder %s20, 15
      %s229 = scalar_select %p228, %s20, 15
      %s230 = smul.addr %s229, 8
      %s231 = scalar_lea.vmem %s3, %s230
      %p232 = pneg %p155
      %p233 = pneg %p152
      %p234 = scmp.lt.s32.totalorder %s20, 15
      %s235 = scalar_select %p234, %s20, 15
      %s236 = smul.addr %s235, 8
      %s237 = scalar_lea.vmem %s4, %s236
      %s238 = smul.u32 64, %s20
      %p239 = scmp.lt.s32.totalorder %s238, 1023
      %s240 = scalar_select %p239, %s238, 1023
      %p241 = scmp.lt.s32.totalorder %s21, 0
      %s242 = scalar_select %p241, %s21, 0
      %s243 = sadd.s32 %s242, %s240
      %s244 = smul.addr %s243, 4
      %s245 = scalar_lea.vmem %s0, %s244
      %s246 = smul.u32 64, %s20
      %s247 = smul.u32 16, %s21
      %p248 = scmp.lt.s32.totalorder %s247, 15
      %s249 = scalar_select %p248, %s247, 15
      %s250 = smul.addr %s249, 4
      %s251 = scalar_lea.vmem %s1, %s250
      %s252 = smul.u32 16, %s21
      %s253 = smul.u32 64, %s20
      %p254 = scmp.lt.s32.totalorder %s253, 1023
      %s255 = scalar_select %p254, %s253, 1023
      %s256 = smul.addr %s255, 8
      %s257 = scalar_lea.vmem %s2, %s256
      %s258 = smul.u32 64, %s20
      %p259 = scmp.lt.s32.totalorder %s20, 15
      %s260 = scalar_select %p259, %s20, 15
      %s261 = smul.addr %s260, 8
      %s262 = scalar_lea.vmem %s3, %s261
      %p263 = scmp.lt.s32.totalorder %s20, 15
      %s264 = scalar_select %p263, %s20, 15
      %s265 = smul.addr %s264, 8
      %s266 = scalar_lea.vmem %s4, %s265
      %p267 = scmp.eq.s32.totalorder %s21, 0
      // Predicated region
      $region29: #{_conv_layer.2} parent=27 // pred_check
        %p268 = pneg %p267
      $region30: #{_conv_layer.2} parent=27 // pred_check_branch
        %270 = sbr.rel (%p268) target = $region32
      $region31: #{_conv_layer.2} parent=27 // pred_region
        %271 = vst [vmem:[%s257] sm:$0xff] 0.0
        %272 = vst [vmem:[%s257 + $0x8] sm:$0xff] 0.0
        %273 = vst [vmem:[%s257 + $0x10] sm:$0xff] 0.0
        %274 = vst [vmem:[%s257 + $0x18] sm:$0xff] 0.0
        %275 = vst [vmem:[%s257 + $0x20] sm:$0xff] 0.0
        %276 = vst [vmem:[%s257 + $0x28] sm:$0xff] 0.0
        %277 = vst [vmem:[%s257 + $0x30] sm:$0xff] 0.0
        %278 = vst [vmem:[%s257 + $0x38] sm:$0xff] 0.0
        %279 = vst [vmem:[%s257 + $0x40] sm:$0xff] 0.0
        %280 = vst [vmem:[%s257 + $0x48] sm:$0xff] 0.0
        %281 = vst [vmem:[%s257 + $0x50] sm:$0xff] 0.0
        %282 = vst [vmem:[%s257 + $0x58] sm:$0xff] 0.0
        %283 = vst [vmem:[%s257 + $0x60] sm:$0xff] 0.0
        %284 = vst [vmem:[%s257 + $0x68] sm:$0xff] 0.0
        %285 = vst [vmem:[%s257 + $0x70] sm:$0xff] 0.0
        %286 = vst [vmem:[%s257 + $0x78] sm:$0xff] 0.0
        %287 = vst [vmem:[%s257 + $0x80] sm:$0xff] 0.0
        %288 = vst [vmem:[%s257 + $0x88] sm:$0xff] 0.0
        %289 = vst [vmem:[%s257 + $0x90] sm:$0xff] 0.0
        %290 = vst [vmem:[%s257 + $0x98] sm:$0xff] 0.0
        %291 = vst [vmem:[%s257 + $0xa0] sm:$0xff] 0.0
        %292 = vst [vmem:[%s257 + $0xa8] sm:$0xff] 0.0
        %293 = vst [vmem:[%s257 + $0xb0] sm:$0xff] 0.0
        %294 = vst [vmem:[%s257 + $0xb8] sm:$0xff] 0.0
        %295 = vst [vmem:[%s257 + $0xc0] sm:$0xff] 0.0
        %296 = vst [vmem:[%s257 + $0xc8] sm:$0xff] 0.0
        %297 = vst [vmem:[%s257 + $0xd0] sm:$0xff] 0.0
        %298 = vst [vmem:[%s257 + $0xd8] sm:$0xff] 0.0
        %299 = vst [vmem:[%s257 + $0xe0] sm:$0xff] 0.0
        %300 = vst [vmem:[%s257 + $0xe8] sm:$0xff] 0.0
        %301 = vst [vmem:[%s257 + $0xf0] sm:$0xff] 0.0
        %302 = vst [vmem:[%s257 + $0xf8] sm:$0xff] 0.0
        %303 = vst [vmem:[%s257 + $0x100] sm:$0xff] 0.0
        %304 = vst [vmem:[%s257 + $0x108] sm:$0xff] 0.0
        %305 = vst [vmem:[%s257 + $0x110] sm:$0xff] 0.0
        %306 = vst [vmem:[%s257 + $0x118] sm:$0xff] 0.0
        %307 = vst [vmem:[%s257 + $0x120] sm:$0xff] 0.0
        %308 = vst [vmem:[%s257 + $0x128] sm:$0xff] 0.0
        %309 = vst [vmem:[%s257 + $0x130] sm:$0xff] 0.0
        %310 = vst [vmem:[%s257 + $0x138] sm:$0xff] 0.0
        %311 = vst [vmem:[%s257 + $0x140] sm:$0xff] 0.0
        %312 = vst [vmem:[%s257 + $0x148] sm:$0xff] 0.0
        %313 = vst [vmem:[%s257 + $0x150] sm:$0xff] 0.0
        %314 = vst [vmem:[%s257 + $0x158] sm:$0xff] 0.0
        %315 = vst [vmem:[%s257 + $0x160] sm:$0xff] 0.0
        %316 = vst [vmem:[%s257 + $0x168] sm:$0xff] 0.0
        %317 = vst [vmem:[%s257 + $0x170] sm:$0xff] 0.0
        %318 = vst [vmem:[%s257 + $0x178] sm:$0xff] 0.0
        %319 = vst [vmem:[%s257 + $0x180] sm:$0xff] 0.0
        %320 = vst [vmem:[%s257 + $0x188] sm:$0xff] 0.0
        %321 = vst [vmem:[%s257 + $0x190] sm:$0xff] 0.0
        %322 = vst [vmem:[%s257 + $0x198] sm:$0xff] 0.0
        %323 = vst [vmem:[%s257 + $0x1a0] sm:$0xff] 0.0
        %324 = vst [vmem:[%s257 + $0x1a8] sm:$0xff] 0.0
        %325 = vst [vmem:[%s257 + $0x1b0] sm:$0xff] 0.0
        %326 = vst [vmem:[%s257 + $0x1b8] sm:$0xff] 0.0
        %327 = vst [vmem:[%s257 + $0x1c0] sm:$0xff] 0.0
        %328 = vst [vmem:[%s257 + $0x1c8] sm:$0xff] 0.0
        %329 = vst [vmem:[%s257 + $0x1d0] sm:$0xff] 0.0
        %330 = vst [vmem:[%s257 + $0x1d8] sm:$0xff] 0.0
        %331 = vst [vmem:[%s257 + $0x1e0] sm:$0xff] 0.0
        %332 = vst [vmem:[%s257 + $0x1e8] sm:$0xff] 0.0
        %333 = vst [vmem:[%s257 + $0x1f0] sm:$0xff] 0.0
        %334 = vst [vmem:[%s257 + $0x1f8] sm:$0xff] 0.0
      $region32: #{_conv_layer.2} parent=27 // pred_fallthru
        _
      %v335 = vld [vmem:[%s257] sm:$0xff]
      %v336 = vld [vmem:[%s257 + $0x8] sm:$0xff]
      %v337 = vld [vmem:[%s257 + $0x10] sm:$0xff]
      %v338 = vld [vmem:[%s257 + $0x18] sm:$0xff]
      %v339 = vld [vmem:[%s257 + $0x20] sm:$0xff]
      %v340 = vld [vmem:[%s257 + $0x28] sm:$0xff]
      %v341 = vld [vmem:[%s257 + $0x30] sm:$0xff]
      %v342 = vld [vmem:[%s257 + $0x38] sm:$0xff]
      %v343 = vld [vmem:[%s257 + $0x40] sm:$0xff]
      %v344 = vld [vmem:[%s257 + $0x48] sm:$0xff]
      %v345 = vld [vmem:[%s257 + $0x50] sm:$0xff]
      %v346 = vld [vmem:[%s257 + $0x58] sm:$0xff]
      %v347 = vld [vmem:[%s257 + $0x60] sm:$0xff]
      %v348 = vld [vmem:[%s257 + $0x68] sm:$0xff]
      %v349 = vld [vmem:[%s257 + $0x70] sm:$0xff]
      %v350 = vld [vmem:[%s257 + $0x78] sm:$0xff]
      %v351 = vld [vmem:[%s257 + $0x80] sm:$0xff]
      %v352 = vld [vmem:[%s257 + $0x88] sm:$0xff]
      %v353 = vld [vmem:[%s257 + $0x90] sm:$0xff]
      %v354 = vld [vmem:[%s257 + $0x98] sm:$0xff]
      %v355 = vld [vmem:[%s257 + $0xa0] sm:$0xff]
      %v356 = vld [vmem:[%s257 + $0xa8] sm:$0xff]
      %v357 = vld [vmem:[%s257 + $0xb0] sm:$0xff]
      %v358 = vld [vmem:[%s257 + $0xb8] sm:$0xff]
      %v359 = vld [vmem:[%s257 + $0xc0] sm:$0xff]
      %v360 = vld [vmem:[%s257 + $0xc8] sm:$0xff]
      %v361 = vld [vmem:[%s257 + $0xd0] sm:$0xff]
      %v362 = vld [vmem:[%s257 + $0xd8] sm:$0xff]
      %v363 = vld [vmem:[%s257 + $0xe0] sm:$0xff]
      %v364 = vld [vmem:[%s257 + $0xe8] sm:$0xff]
      %v365 = vld [vmem:[%s257 + $0xf0] sm:$0xff]
      %v366 = vld [vmem:[%s257 + $0xf8] sm:$0xff]
      %v367 = vld [vmem:[%s257 + $0x100] sm:$0xff]
      %v368 = vld [vmem:[%s257 + $0x108] sm:$0xff]
      %v369 = vld [vmem:[%s257 + $0x110] sm:$0xff]
      %v370 = vld [vmem:[%s257 + $0x118] sm:$0xff]
      %v371 = vld [vmem:[%s257 + $0x120] sm:$0xff]
      %v372 = vld [vmem:[%s257 + $0x128] sm:$0xff]
      %v373 = vld [vmem:[%s257 + $0x130] sm:$0xff]
      %v374 = vld [vmem:[%s257 + $0x138] sm:$0xff]
      %v375 = vld [vmem:[%s257 + $0x140] sm:$0xff]
      %v376 = vld [vmem:[%s257 + $0x148] sm:$0xff]
      %v377 = vld [vmem:[%s257 + $0x150] sm:$0xff]
      %v378 = vld [vmem:[%s257 + $0x158] sm:$0xff]
      %v379 = vld [vmem:[%s257 + $0x160] sm:$0xff]
      %v380 = vld [vmem:[%s257 + $0x168] sm:$0xff]
      %v381 = vld [vmem:[%s257 + $0x170] sm:$0xff]
      %v382 = vld [vmem:[%s257 + $0x178] sm:$0xff]
      %v383 = vld [vmem:[%s257 + $0x180] sm:$0xff]
      %v384 = vld [vmem:[%s257 + $0x188] sm:$0xff]
      %v385 = vld [vmem:[%s257 + $0x190] sm:$0xff]
      %v386 = vld [vmem:[%s257 + $0x198] sm:$0xff]
      %v387 = vld [vmem:[%s257 + $0x1a0] sm:$0xff]
      %v388 = vld [vmem:[%s257 + $0x1a8] sm:$0xff]
      %v389 = vld [vmem:[%s257 + $0x1b0] sm:$0xff]
      %v390 = vld [vmem:[%s257 + $0x1b8] sm:$0xff]
      %v391 = vld [vmem:[%s257 + $0x1c0] sm:$0xff]
      %v392 = vld [vmem:[%s257 + $0x1c8] sm:$0xff]
      %v393 = vld [vmem:[%s257 + $0x1d0] sm:$0xff]
      %v394 = vld [vmem:[%s257 + $0x1d8] sm:$0xff]
      %v395 = vld [vmem:[%s257 + $0x1e0] sm:$0xff]
      %v396 = vld [vmem:[%s257 + $0x1e8] sm:$0xff]
      %v397 = vld [vmem:[%s257 + $0x1f0] sm:$0xff]
      %v398 = vld [vmem:[%s257 + $0x1f8] sm:$0xff]
      %v399 = vld [vmem:[%s245] sm:$0xf]
      %v400 = vld [vmem:[%s245 + $0x4] sm:$0xf]
      %v401 = vld [vmem:[%s245 + $0x8] sm:$0xf]
      %v402 = vld [vmem:[%s245 + $0xc] sm:$0xf]
      %v403 = vld [vmem:[%s245 + $0x10] sm:$0xf]
      %v404 = vld [vmem:[%s245 + $0x14] sm:$0xf]
      %v405 = vld [vmem:[%s245 + $0x18] sm:$0xf]
      %v406 = vld [vmem:[%s245 + $0x1c] sm:$0xf]
      %v407 = vld [vmem:[%s245 + $0x20] sm:$0xf]
      %v408 = vld [vmem:[%s245 + $0x24] sm:$0xf]
      %v409 = vld [vmem:[%s245 + $0x28] sm:$0xf]
      %v410 = vld [vmem:[%s245 + $0x2c] sm:$0xf]
      %v411 = vld [vmem:[%s245 + $0x30] sm:$0xf]
      %v412 = vld [vmem:[%s245 + $0x34] sm:$0xf]
      %v413 = vld [vmem:[%s245 + $0x38] sm:$0xf]
      %v414 = vld [vmem:[%s245 + $0x3c] sm:$0xf]
      %v415 = vld [vmem:[%s245 + $0x40] sm:$0xf]
      %v416 = vld [vmem:[%s245 + $0x44] sm:$0xf]
      %v417 = vld [vmem:[%s245 + $0x48] sm:$0xf]
      %v418 = vld [vmem:[%s245 + $0x4c] sm:$0xf]
      %v419 = vld [vmem:[%s245 + $0x50] sm:$0xf]
      %v420 = vld [vmem:[%s245 + $0x54] sm:$0xf]
      %v421 = vld [vmem:[%s245 + $0x58] sm:$0xf]
      %v422 = vld [vmem:[%s245 + $0x5c] sm:$0xf]
      %v423 = vld [vmem:[%s245 + $0x60] sm:$0xf]
      %v424 = vld [vmem:[%s245 + $0x64] sm:$0xf]
      %v425 = vld [vmem:[%s245 + $0x68] sm:$0xf]
      %v426 = vld [vmem:[%s245 + $0x6c] sm:$0xf]
      %v427 = vld [vmem:[%s245 + $0x70] sm:$0xf]
      %v428 = vld [vmem:[%s245 + $0x74] sm:$0xf]
      %v429 = vld [vmem:[%s245 + $0x78] sm:$0xf]
      %v430 = vld [vmem:[%s245 + $0x7c] sm:$0xf]
      %v431 = vld [vmem:[%s245 + $0x80] sm:$0xf]
      %v432 = vld [vmem:[%s245 + $0x84] sm:$0xf]
      %v433 = vld [vmem:[%s245 + $0x88] sm:$0xf]
      %v434 = vld [vmem:[%s245 + $0x8c] sm:$0xf]
      %v435 = vld [vmem:[%s245 + $0x90] sm:$0xf]
      %v436 = vld [vmem:[%s245 + $0x94] sm:$0xf]
      %v437 = vld [vmem:[%s245 + $0x98] sm:$0xf]
      %v438 = vld [vmem:[%s245 + $0x9c] sm:$0xf]
      %v439 = vld [vmem:[%s245 + $0xa0] sm:$0xf]
      %v440 = vld [vmem:[%s245 + $0xa4] sm:$0xf]
      %v441 = vld [vmem:[%s245 + $0xa8] sm:$0xf]
      %v442 = vld [vmem:[%s245 + $0xac] sm:$0xf]
      %v443 = vld [vmem:[%s245 + $0xb0] sm:$0xf]
      %v444 = vld [vmem:[%s245 + $0xb4] sm:$0xf]
      %v445 = vld [vmem:[%s245 + $0xb8] sm:$0xf]
      %v446 = vld [vmem:[%s245 + $0xbc] sm:$0xf]
      %v447 = vld [vmem:[%s245 + $0xc0] sm:$0xf]
      %v448 = vld [vmem:[%s245 + $0xc4] sm:$0xf]
      %v449 = vld [vmem:[%s245 + $0xc8] sm:$0xf]
      %v450 = vld [vmem:[%s245 + $0xcc] sm:$0xf]
      %v451 = vld [vmem:[%s245 + $0xd0] sm:$0xf]
      %v452 = vld [vmem:[%s245 + $0xd4] sm:$0xf]
      %v453 = vld [vmem:[%s245 + $0xd8] sm:$0xf]
      %v454 = vld [vmem:[%s245 + $0xdc] sm:$0xf]
      %v455 = vld [vmem:[%s245 + $0xe0] sm:$0xf]
      %v456 = vld [vmem:[%s245 + $0xe4] sm:$0xf]
      %v457 = vld [vmem:[%s245 + $0xe8] sm:$0xf]
      %v458 = vld [vmem:[%s245 + $0xec] sm:$0xf]
      %v459 = vld [vmem:[%s245 + $0xf0] sm:$0xf]
      %v460 = vld [vmem:[%s245 + $0xf4] sm:$0xf]
      %v461 = vld [vmem:[%s245 + $0xf8] sm:$0xf]
      %v462 = vld [vmem:[%s245 + $0xfc] sm:$0xf]
      %v463 = vld [vmem:[%s251] sm:$0xf]
      %v464 = vld [vmem:[%s251 + $0x4] sm:$0xf]
      %v465 = vld [vmem:[%s251 + $0x8] sm:$0xf]
      %v466 = vld [vmem:[%s251 + $0xc] sm:$0xf]
      %v467 = vld [vmem:[%s251 + $0x10] sm:$0xf]
      %v468 = vld [vmem:[%s251 + $0x14] sm:$0xf]
      %v469 = vld [vmem:[%s251 + $0x18] sm:$0xf]
      %v470 = vld [vmem:[%s251 + $0x1c] sm:$0xf]
      %v471 = vld [vmem:[%s251 + $0x20] sm:$0xf]
      %v472 = vld [vmem:[%s251 + $0x24] sm:$0xf]
      %v473 = vld [vmem:[%s251 + $0x28] sm:$0xf]
      %v474 = vld [vmem:[%s251 + $0x2c] sm:$0xf]
      %v475 = vld [vmem:[%s251 + $0x30] sm:$0xf]
      %v476 = vld [vmem:[%s251 + $0x34] sm:$0xf]
      %v477 = vld [vmem:[%s251 + $0x38] sm:$0xf]
      %v478 = vld [vmem:[%s251 + $0x3c] sm:$0xf]
      %v543 = vunpack.c.l.b16 %v399
      %v544 = vunpack.c.l.b16 %v400
      %v545 = vunpack.c.l.b16 %v401
      %v546 = vunpack.c.l.b16 %v402
      %v547 = vunpack.c.l.b16 %v403
      %v548 = vunpack.c.l.b16 %v404
      %v549 = vunpack.c.l.b16 %v405
      %v550 = vunpack.c.l.b16 %v406
      %v551 = vunpack.c.l.b16 %v407
      %v552 = vunpack.c.l.b16 %v408
      %v553 = vunpack.c.l.b16 %v409
      %v554 = vunpack.c.l.b16 %v410
      %v555 = vunpack.c.l.b16 %v411
      %v556 = vunpack.c.l.b16 %v412
      %v557 = vunpack.c.l.b16 %v413
      %v558 = vunpack.c.l.b16 %v414
      %v559 = vunpack.c.l.b16 %v415
      %v560 = vunpack.c.l.b16 %v416
      %v561 = vunpack.c.l.b16 %v417
      %v562 = vunpack.c.l.b16 %v418
      %v563 = vunpack.c.l.b16 %v419
      %v564 = vunpack.c.l.b16 %v420
      %v565 = vunpack.c.l.b16 %v421
      %v566 = vunpack.c.l.b16 %v422
      %v567 = vunpack.c.l.b16 %v423
      %v568 = vunpack.c.l.b16 %v424
      %v569 = vunpack.c.l.b16 %v425
      %v570 = vunpack.c.l.b16 %v426
      %v571 = vunpack.c.l.b16 %v427
      %v572 = vunpack.c.l.b16 %v428
      %v573 = vunpack.c.l.b16 %v429
      %v574 = vunpack.c.l.b16 %v430
      %v575 = vunpack.c.l.b16 %v431
      %v576 = vunpack.c.l.b16 %v432
      %v577 = vunpack.c.l.b16 %v433
      %v578 = vunpack.c.l.b16 %v434
      %v579 = vunpack.c.l.b16 %v435
      %v580 = vunpack.c.l.b16 %v436
      %v581 = vunpack.c.l.b16 %v437
      %v582 = vunpack.c.l.b16 %v438
      %v583 = vunpack.c.l.b16 %v439
      %v584 = vunpack.c.l.b16 %v440
      %v585 = vunpack.c.l.b16 %v441
      %v586 = vunpack.c.l.b16 %v442
      %v587 = vunpack.c.l.b16 %v443
      %v588 = vunpack.c.l.b16 %v444
      %v589 = vunpack.c.l.b16 %v445
      %v590 = vunpack.c.l.b16 %v446
      %v591 = vunpack.c.l.b16 %v447
      %v592 = vunpack.c.l.b16 %v448
      %v593 = vunpack.c.l.b16 %v449
      %v594 = vunpack.c.l.b16 %v450
      %v595 = vunpack.c.l.b16 %v451
      %v596 = vunpack.c.l.b16 %v452
      %v597 = vunpack.c.l.b16 %v453
      %v598 = vunpack.c.l.b16 %v454
      %v599 = vunpack.c.l.b16 %v455
      %v600 = vunpack.c.l.b16 %v456
      %v601 = vunpack.c.l.b16 %v457
      %v602 = vunpack.c.l.b16 %v458
      %v603 = vunpack.c.l.b16 %v459
      %v604 = vunpack.c.l.b16 %v460
      %v605 = vunpack.c.l.b16 %v461
      %v606 = vunpack.c.l.b16 %v462
      %v607 = vpack.c.b16 %v544, %v543
      %v608 = vpack.c.b16 %v546, %v545
      %v609 = vpack.c.b16 %v548, %v547
      %v610 = vpack.c.b16 %v550, %v549
      %v611 = vpack.c.b16 %v552, %v551
      %v612 = vpack.c.b16 %v554, %v553
      %v613 = vpack.c.b16 %v556, %v555
      %v614 = vpack.c.b16 %v558, %v557
      %v615 = vpack.c.b16 %v560, %v559
      %v616 = vpack.c.b16 %v562, %v561
      %v617 = vpack.c.b16 %v564, %v563
      %v618 = vpack.c.b16 %v566, %v565
      %v619 = vpack.c.b16 %v568, %v567
      %v620 = vpack.c.b16 %v570, %v569
      %v621 = vpack.c.b16 %v572, %v571
      %v622 = vpack.c.b16 %v574, %v573
      %v623 = vpack.c.b16 %v576, %v575
      %v624 = vpack.c.b16 %v578, %v577
      %v625 = vpack.c.b16 %v580, %v579
      %v626 = vpack.c.b16 %v582, %v581
      %v627 = vpack.c.b16 %v584, %v583
      %v628 = vpack.c.b16 %v586, %v585
      %v629 = vpack.c.b16 %v588, %v587
      %v630 = vpack.c.b16 %v590, %v589
      %v631 = vpack.c.b16 %v592, %v591
      %v632 = vpack.c.b16 %v594, %v593
      %v633 = vpack.c.b16 %v596, %v595
      %v634 = vpack.c.b16 %v598, %v597
      %v635 = vpack.c.b16 %v600, %v599
      %v636 = vpack.c.b16 %v602, %v601
      %v637 = vpack.c.b16 %v604, %v603
      %v638 = vpack.c.b16 %v606, %v605
      %v687 = vunpack.c.l.b16 %v463
      %v688 = vunpack.c.l.b16 %v464
      %v689 = vunpack.c.l.b16 %v465
      %v690 = vunpack.c.l.b16 %v466
      %v691 = vunpack.c.l.b16 %v467
      %v692 = vunpack.c.l.b16 %v468
      %v693 = vunpack.c.l.b16 %v469
      %v694 = vunpack.c.l.b16 %v470
      %v695 = vunpack.c.l.b16 %v471
      %v696 = vunpack.c.l.b16 %v472
      %v697 = vunpack.c.l.b16 %v473
      %v698 = vunpack.c.l.b16 %v474
      %v699 = vunpack.c.l.b16 %v475
      %v700 = vunpack.c.l.b16 %v476
      %v701 = vunpack.c.l.b16 %v477
      %v702 = vunpack.c.l.b16 %v478
      %v703 = vpack.c.b16 %v688, %v687
      %v704 = vpack.c.b16 %v690, %v689
      %v705 = vpack.c.b16 %v692, %v691
      %v706 = vpack.c.b16 %v694, %v693
      %v707 = vpack.c.b16 %v696, %v695
      %v708 = vpack.c.b16 %v698, %v697
      %v709 = vpack.c.b16 %v700, %v699
      %v710 = vpack.c.b16 %v702, %v701
      %719 = vmatpush.bf16.msra.mxu0 %v710
      %720 = vmatpush.bf16.msra.mxu0 %v709
      %721 = vmatpush.bf16.msra.mxu0 %v708
      %722 = vmatpush.bf16.msra.mxu0 %v707
      %723 = vmatpush.bf16.msra.mxu0 %v706
      %724 = vmatpush.bf16.msra.mxu0 %v705
      %725 = vmatpush.bf16.msra.mxu0 %v704
      %726 = vmatpush.bf16.msra.mxu0 %v703
      %727 = vmatmul.bf16.gmra.mxu0 %v607
      %v728 = vpop.f32.mrf.mxu0
      %v729 = vadd.f32 0.0, %v728
      %v730 = vpop.f32.mrf.mxu0
      %v731 = vadd.f32 0.0, %v730
      %732 = vmatmul.bf16.gmra.mxu0 %v608
      %v733 = vpop.f32.mrf.mxu0
      %v734 = vadd.f32 0.0, %v733
      %v735 = vpop.f32.mrf.mxu0
      %v736 = vadd.f32 0.0, %v735
      %737 = vmatmul.bf16.gmra.mxu0 %v609
      %v738 = vpop.f32.mrf.mxu0
      %v739 = vadd.f32 0.0, %v738
      %v740 = vpop.f32.mrf.mxu0
      %v741 = vadd.f32 0.0, %v740
      %742 = vmatmul.bf16.gmra.mxu0 %v610
      %v743 = vpop.f32.mrf.mxu0
      %v744 = vadd.f32 0.0, %v743
      %v745 = vpop.f32.mrf.mxu0
      %v746 = vadd.f32 0.0, %v745
      %747 = vmatmul.bf16.gmra.mxu0 %v611
      %v748 = vpop.f32.mrf.mxu0
      %v749 = vadd.f32 0.0, %v748
      %v750 = vpop.f32.mrf.mxu0
      %v751 = vadd.f32 0.0, %v750
      %752 = vmatmul.bf16.gmra.mxu0 %v612
      %v753 = vpop.f32.mrf.mxu0
      %v754 = vadd.f32 0.0, %v753
      %v755 = vpop.f32.mrf.mxu0
      %v756 = vadd.f32 0.0, %v755
      %757 = vmatmul.bf16.gmra.mxu0 %v613
      %v758 = vpop.f32.mrf.mxu0
      %v759 = vadd.f32 0.0, %v758
      %v760 = vpop.f32.mrf.mxu0
      %v761 = vadd.f32 0.0, %v760
      %762 = vmatmul.bf16.gmra.mxu0 %v614
      %v763 = vpop.f32.mrf.mxu0
      %v764 = vadd.f32 0.0, %v763
      %v765 = vpop.f32.mrf.mxu0
      %v766 = vadd.f32 0.0, %v765
      %767 = vmatmul.bf16.gmra.mxu0 %v615
      %v768 = vpop.f32.mrf.mxu0
      %v769 = vadd.f32 0.0, %v768
      %v770 = vpop.f32.mrf.mxu0
      %v771 = vadd.f32 0.0, %v770
      %772 = vmatmul.bf16.gmra.mxu0 %v616
      %v773 = vpop.f32.mrf.mxu0
      %v774 = vadd.f32 0.0, %v773
      %v775 = vpop.f32.mrf.mxu0
      %v776 = vadd.f32 0.0, %v775
      %777 = vmatmul.bf16.gmra.mxu0 %v617
      %v778 = vpop.f32.mrf.mxu0
      %v779 = vadd.f32 0.0, %v778
      %v780 = vpop.f32.mrf.mxu0
      %v781 = vadd.f32 0.0, %v780
      %782 = vmatmul.bf16.gmra.mxu0 %v618
      %v783 = vpop.f32.mrf.mxu0
      %v784 = vadd.f32 0.0, %v783
      %v785 = vpop.f32.mrf.mxu0
      %v786 = vadd.f32 0.0, %v785
      %787 = vmatmul.bf16.gmra.mxu0 %v619
      %v788 = vpop.f32.mrf.mxu0
      %v789 = vadd.f32 0.0, %v788
      %v790 = vpop.f32.mrf.mxu0
      %v791 = vadd.f32 0.0, %v790
      %792 = vmatmul.bf16.gmra.mxu0 %v620
      %v793 = vpop.f32.mrf.mxu0
      %v794 = vadd.f32 0.0, %v793
      %v795 = vpop.f32.mrf.mxu0
      %v796 = vadd.f32 0.0, %v795
      %797 = vmatmul.bf16.gmra.mxu0 %v621
      %v798 = vpop.f32.mrf.mxu0
      %v799 = vadd.f32 0.0, %v798
      %v800 = vpop.f32.mrf.mxu0
      %v801 = vadd.f32 0.0, %v800
      %802 = vmatmul.bf16.gmra.mxu0 %v622
      %v803 = vpop.f32.mrf.mxu0
      %v804 = vadd.f32 0.0, %v803
      %v805 = vpop.f32.mrf.mxu0
      %v806 = vadd.f32 0.0, %v805
      %807 = vmatmul.bf16.gmra.mxu0 %v623
      %v808 = vpop.f32.mrf.mxu0
      %v809 = vadd.f32 0.0, %v808
      %v810 = vpop.f32.mrf.mxu0
      %v811 = vadd.f32 0.0, %v810
      %812 = vmatmul.bf16.gmra.mxu0 %v624
      %v813 = vpop.f32.mrf.mxu0
      %v814 = vadd.f32 0.0, %v813
      %v815 = vpop.f32.mrf.mxu0
      %v816 = vadd.f32 0.0, %v815
      %817 = vmatmul.bf16.gmra.mxu0 %v625
      %v818 = vpop.f32.mrf.mxu0
      %v819 = vadd.f32 0.0, %v818
      %v820 = vpop.f32.mrf.mxu0
      %v821 = vadd.f32 0.0, %v820
      %822 = vmatmul.bf16.gmra.mxu0 %v626
      %v823 = vpop.f32.mrf.mxu0
      %v824 = vadd.f32 0.0, %v823
      %v825 = vpop.f32.mrf.mxu0
      %v826 = vadd.f32 0.0, %v825
      %827 = vmatmul.bf16.gmra.mxu0 %v627
      %v828 = vpop.f32.mrf.mxu0
      %v829 = vadd.f32 0.0, %v828
      %v830 = vpop.f32.mrf.mxu0
      %v831 = vadd.f32 0.0, %v830
      %832 = vmatmul.bf16.gmra.mxu0 %v628
      %v833 = vpop.f32.mrf.mxu0
      %v834 = vadd.f32 0.0, %v833
      %v835 = vpop.f32.mrf.mxu0
      %v836 = vadd.f32 0.0, %v835
      %837 = vmatmul.bf16.gmra.mxu0 %v629
      %v838 = vpop.f32.mrf.mxu0
      %v839 = vadd.f32 0.0, %v838
      %v840 = vpop.f32.mrf.mxu0
      %v841 = vadd.f32 0.0, %v840
      %842 = vmatmul.bf16.gmra.mxu0 %v630
      %v843 = vpop.f32.mrf.mxu0
      %v844 = vadd.f32 0.0, %v843
      %v845 = vpop.f32.mrf.mxu0
      %v846 = vadd.f32 0.0, %v845
      %847 = vmatmul.bf16.gmra.mxu0 %v631
      %v848 = vpop.f32.mrf.mxu0
      %v849 = vadd.f32 0.0, %v848
      %v850 = vpop.f32.mrf.mxu0
      %v851 = vadd.f32 0.0, %v850
      %852 = vmatmul.bf16.gmra.mxu0 %v632
      %v853 = vpop.f32.mrf.mxu0
      %v854 = vadd.f32 0.0, %v853
      %v855 = vpop.f32.mrf.mxu0
      %v856 = vadd.f32 0.0, %v855
      %857 = vmatmul.bf16.gmra.mxu0 %v633
      %v858 = vpop.f32.mrf.mxu0
      %v859 = vadd.f32 0.0, %v858
      %v860 = vpop.f32.mrf.mxu0
      %v861 = vadd.f32 0.0, %v860
      %862 = vmatmul.bf16.gmra.mxu0 %v634
      %v863 = vpop.f32.mrf.mxu0
      %v864 = vadd.f32 0.0, %v863
      %v865 = vpop.f32.mrf.mxu0
      %v866 = vadd.f32 0.0, %v865
      %867 = vmatmul.bf16.gmra.mxu0 %v635
      %v868 = vpop.f32.mrf.mxu0
      %v869 = vadd.f32 0.0, %v868
      %v870 = vpop.f32.mrf.mxu0
      %v871 = vadd.f32 0.0, %v870
      %872 = vmatmul.bf16.gmra.mxu0 %v636
      %v873 = vpop.f32.mrf.mxu0
      %v874 = vadd.f32 0.0, %v873
      %v875 = vpop.f32.mrf.mxu0
      %v876 = vadd.f32 0.0, %v875
      %877 = vmatmul.bf16.gmra.mxu0 %v637
      %v878 = vpop.f32.mrf.mxu0
      %v879 = vadd.f32 0.0, %v878
      %v880 = vpop.f32.mrf.mxu0
      %v881 = vadd.f32 0.0, %v880
      %882 = vmatmul.bf16.gmra.mxu0 %v638
      %v883 = vpop.f32.mrf.mxu0
      %v884 = vadd.f32 0.0, %v883
      %v885 = vpop.f32.mrf.mxu0
      %v886 = vadd.f32 0.0, %v885
      %887 = vdwg.mxu0
      %v888 = vadd.f32 %v335, %v729
      %v889 = vadd.f32 %v336, %v731
      %v890 = vadd.f32 %v337, %v734
      %v891 = vadd.f32 %v338, %v736
      %v892 = vadd.f32 %v339, %v739
      %v893 = vadd.f32 %v340, %v741
      %v894 = vadd.f32 %v341, %v744
      %v895 = vadd.f32 %v342, %v746
      %v896 = vadd.f32 %v343, %v749
      %v897 = vadd.f32 %v344, %v751
      %v898 = vadd.f32 %v345, %v754
      %v899 = vadd.f32 %v346, %v756
      %v900 = vadd.f32 %v347, %v759
      %v901 = vadd.f32 %v348, %v761
      %v902 = vadd.f32 %v349, %v764
      %v903 = vadd.f32 %v350, %v766
      %v904 = vadd.f32 %v351, %v769
      %v905 = vadd.f32 %v352, %v771
      %v906 = vadd.f32 %v353, %v774
      %v907 = vadd.f32 %v354, %v776
      %v908 = vadd.f32 %v355, %v779
      %v909 = vadd.f32 %v356, %v781
      %v910 = vadd.f32 %v357, %v784
      %v911 = vadd.f32 %v358, %v786
      %v912 = vadd.f32 %v359, %v789
      %v913 = vadd.f32 %v360, %v791
      %v914 = vadd.f32 %v361, %v794
      %v915 = vadd.f32 %v362, %v796
      %v916 = vadd.f32 %v363, %v799
      %v917 = vadd.f32 %v364, %v801
      %v918 = vadd.f32 %v365, %v804
      %v919 = vadd.f32 %v366, %v806
      %v920 = vadd.f32 %v367, %v809
      %v921 = vadd.f32 %v368, %v811
      %v922 = vadd.f32 %v369, %v814
      %v923 = vadd.f32 %v370, %v816
      %v924 = vadd.f32 %v371, %v819
      %v925 = vadd.f32 %v372, %v821
      %v926 = vadd.f32 %v373, %v824
      %v927 = vadd.f32 %v374, %v826
      %v928 = vadd.f32 %v375, %v829
      %v929 = vadd.f32 %v376, %v831
      %v930 = vadd.f32 %v377, %v834
      %v931 = vadd.f32 %v378, %v836
      %v932 = vadd.f32 %v379, %v839
      %v933 = vadd.f32 %v380, %v841
      %v934 = vadd.f32 %v381, %v844
      %v935 = vadd.f32 %v382, %v846
      %v936 = vadd.f32 %v383, %v849
      %v937 = vadd.f32 %v384, %v851
      %v938 = vadd.f32 %v385, %v854
      %v939 = vadd.f32 %v386, %v856
      %v940 = vadd.f32 %v387, %v859
      %v941 = vadd.f32 %v388, %v861
      %v942 = vadd.f32 %v389, %v864
      %v943 = vadd.f32 %v390, %v866
      %v944 = vadd.f32 %v391, %v869
      %v945 = vadd.f32 %v392, %v871
      %v946 = vadd.f32 %v393, %v874
      %v947 = vadd.f32 %v394, %v876
      %v948 = vadd.f32 %v395, %v879
      %v949 = vadd.f32 %v396, %v881
      %v950 = vadd.f32 %v397, %v884
      %v951 = vadd.f32 %v398, %v886
      %952 = vst [vmem:[%s257] sm:$0xff] %v888
      %953 = vst [vmem:[%s257 + $0x8] sm:$0xff] %v889
      %954 = vst [vmem:[%s257 + $0x10] sm:$0xff] %v890
      %955 = vst [vmem:[%s257 + $0x18] sm:$0xff] %v891
      %956 = vst [vmem:[%s257 + $0x20] sm:$0xff] %v892
      %957 = vst [vmem:[%s257 + $0x28] sm:$0xff] %v893
      %958 = vst [vmem:[%s257 + $0x30] sm:$0xff] %v894
      %959 = vst [vmem:[%s257 + $0x38] sm:$0xff] %v895
      %960 = vst [vmem:[%s257 + $0x40] sm:$0xff] %v896
      %961 = vst [vmem:[%s257 + $0x48] sm:$0xff] %v897
      %962 = vst [vmem:[%s257 + $0x50] sm:$0xff] %v898
      %963 = vst [vmem:[%s257 + $0x58] sm:$0xff] %v899
      %964 = vst [vmem:[%s257 + $0x60] sm:$0xff] %v900
      %965 = vst [vmem:[%s257 + $0x68] sm:$0xff] %v901
      %966 = vst [vmem:[%s257 + $0x70] sm:$0xff] %v902
      %967 = vst [vmem:[%s257 + $0x78] sm:$0xff] %v903
      %968 = vst [vmem:[%s257 + $0x80] sm:$0xff] %v904
      %969 = vst [vmem:[%s257 + $0x88] sm:$0xff] %v905
      %970 = vst [vmem:[%s257 + $0x90] sm:$0xff] %v906
      %971 = vst [vmem:[%s257 + $0x98] sm:$0xff] %v907
      %972 = vst [vmem:[%s257 + $0xa0] sm:$0xff] %v908
      %973 = vst [vmem:[%s257 + $0xa8] sm:$0xff] %v909
      %974 = vst [vmem:[%s257 + $0xb0] sm:$0xff] %v910
      %975 = vst [vmem:[%s257 + $0xb8] sm:$0xff] %v911
      %976 = vst [vmem:[%s257 + $0xc0] sm:$0xff] %v912
      %977 = vst [vmem:[%s257 + $0xc8] sm:$0xff] %v913
      %978 = vst [vmem:[%s257 + $0xd0] sm:$0xff] %v914
      %979 = vst [vmem:[%s257 + $0xd8] sm:$0xff] %v915
      %980 = vst [vmem:[%s257 + $0xe0] sm:$0xff] %v916
      %981 = vst [vmem:[%s257 + $0xe8] sm:$0xff] %v917
      %982 = vst [vmem:[%s257 + $0xf0] sm:$0xff] %v918
      %983 = vst [vmem:[%s257 + $0xf8] sm:$0xff] %v919
      %984 = vst [vmem:[%s257 + $0x100] sm:$0xff] %v920
      %985 = vst [vmem:[%s257 + $0x108] sm:$0xff] %v921
      %986 = vst [vmem:[%s257 + $0x110] sm:$0xff] %v922
      %987 = vst [vmem:[%s257 + $0x118] sm:$0xff] %v923
      %988 = vst [vmem:[%s257 + $0x120] sm:$0xff] %v924
      %989 = vst [vmem:[%s257 + $0x128] sm:$0xff] %v925
      %990 = vst [vmem:[%s257 + $0x130] sm:$0xff] %v926
      %991 = vst [vmem:[%s257 + $0x138] sm:$0xff] %v927
      %992 = vst [vmem:[%s257 + $0x140] sm:$0xff] %v928
      %993 = vst [vmem:[%s257 + $0x148] sm:$0xff] %v929
      %994 = vst [vmem:[%s257 + $0x150] sm:$0xff] %v930
      %995 = vst [vmem:[%s257 + $0x158] sm:$0xff] %v931
      %996 = vst [vmem:[%s257 + $0x160] sm:$0xff] %v932
      %997 = vst [vmem:[%s257 + $0x168] sm:$0xff] %v933
      %998 = vst [vmem:[%s257 + $0x170] sm:$0xff] %v934
      %999 = vst [vmem:[%s257 + $0x178] sm:$0xff] %v935
      %1000 = vst [vmem:[%s257 + $0x180] sm:$0xff] %v936
      %1001 = vst [vmem:[%s257 + $0x188] sm:$0xff] %v937
      %1002 = vst [vmem:[%s257 + $0x190] sm:$0xff] %v938
      %1003 = vst [vmem:[%s257 + $0x198] sm:$0xff] %v939
      %1004 = vst [vmem:[%s257 + $0x1a0] sm:$0xff] %v940
      %1005 = vst [vmem:[%s257 + $0x1a8] sm:$0xff] %v941
      %1006 = vst [vmem:[%s257 + $0x1b0] sm:$0xff] %v942
      %1007 = vst [vmem:[%s257 + $0x1b8] sm:$0xff] %v943
      %1008 = vst [vmem:[%s257 + $0x1c0] sm:$0xff] %v944
      %1009 = vst [vmem:[%s257 + $0x1c8] sm:$0xff] %v945
      %1010 = vst [vmem:[%s257 + $0x1d0] sm:$0xff] %v946
      %1011 = vst [vmem:[%s257 + $0x1d8] sm:$0xff] %v947
      %1012 = vst [vmem:[%s257 + $0x1e0] sm:$0xff] %v948
      %1013 = vst [vmem:[%s257 + $0x1e8] sm:$0xff] %v949
      %1014 = vst [vmem:[%s257 + $0x1f0] sm:$0xff] %v950
      %1015 = vst [vmem:[%s257 + $0x1f8] sm:$0xff] %v951
      // Predicated region
      $region33: #{_conv_layer.2} parent=27 // pred_check
        %p1016 = pneg %p267
      $region34: #{_conv_layer.2} parent=27 // pred_check_branch
        %1018 = sbr.rel (%p1016) target = $region36
      $region35: #{_conv_layer.2} parent=27 // pred_region
        %v1019 = vld [vmem:[%s257] sm:$0xff]
        %v1020 = vld [vmem:[%s257 + $0x8] sm:$0xff]
        %v1021 = vld [vmem:[%s257 + $0x10] sm:$0xff]
        %v1022 = vld [vmem:[%s257 + $0x18] sm:$0xff]
        %v1023 = vld [vmem:[%s257 + $0x20] sm:$0xff]
        %v1024 = vld [vmem:[%s257 + $0x28] sm:$0xff]
        %v1025 = vld [vmem:[%s257 + $0x30] sm:$0xff]
        %v1026 = vld [vmem:[%s257 + $0x38] sm:$0xff]
        %v1027 = vld [vmem:[%s257 + $0x40] sm:$0xff]
        %v1028 = vld [vmem:[%s257 + $0x48] sm:$0xff]
        %v1029 = vld [vmem:[%s257 + $0x50] sm:$0xff]
        %v1030 = vld [vmem:[%s257 + $0x58] sm:$0xff]
        %v1031 = vld [vmem:[%s257 + $0x60] sm:$0xff]
        %v1032 = vld [vmem:[%s257 + $0x68] sm:$0xff]
        %v1033 = vld [vmem:[%s257 + $0x70] sm:$0xff]
        %v1034 = vld [vmem:[%s257 + $0x78] sm:$0xff]
        %v1035 = vld [vmem:[%s257 + $0x80] sm:$0xff]
        %v1036 = vld [vmem:[%s257 + $0x88] sm:$0xff]
        %v1037 = vld [vmem:[%s257 + $0x90] sm:$0xff]
        %v1038 = vld [vmem:[%s257 + $0x98] sm:$0xff]
        %v1039 = vld [vmem:[%s257 + $0xa0] sm:$0xff]
        %v1040 = vld [vmem:[%s257 + $0xa8] sm:$0xff]
        %v1041 = vld [vmem:[%s257 + $0xb0] sm:$0xff]
        %v1042 = vld [vmem:[%s257 + $0xb8] sm:$0xff]
        %v1043 = vld [vmem:[%s257 + $0xc0] sm:$0xff]
        %v1044 = vld [vmem:[%s257 + $0xc8] sm:$0xff]
        %v1045 = vld [vmem:[%s257 + $0xd0] sm:$0xff]
        %v1046 = vld [vmem:[%s257 + $0xd8] sm:$0xff]
        %v1047 = vld [vmem:[%s257 + $0xe0] sm:$0xff]
        %v1048 = vld [vmem:[%s257 + $0xe8] sm:$0xff]
        %v1049 = vld [vmem:[%s257 + $0xf0] sm:$0xff]
        %v1050 = vld [vmem:[%s257 + $0xf8] sm:$0xff]
        %v1051 = vld [vmem:[%s257 + $0x100] sm:$0xff]
        %v1052 = vld [vmem:[%s257 + $0x108] sm:$0xff]
        %v1053 = vld [vmem:[%s257 + $0x110] sm:$0xff]
        %v1054 = vld [vmem:[%s257 + $0x118] sm:$0xff]
        %v1055 = vld [vmem:[%s257 + $0x120] sm:$0xff]
        %v1056 = vld [vmem:[%s257 + $0x128] sm:$0xff]
        %v1057 = vld [vmem:[%s257 + $0x130] sm:$0xff]
        %v1058 = vld [vmem:[%s257 + $0x138] sm:$0xff]
        %v1059 = vld [vmem:[%s257 + $0x140] sm:$0xff]
        %v1060 = vld [vmem:[%s257 + $0x148] sm:$0xff]
        %v1061 = vld [vmem:[%s257 + $0x150] sm:$0xff]
        %v1062 = vld [vmem:[%s257 + $0x158] sm:$0xff]
        %v1063 = vld [vmem:[%s257 + $0x160] sm:$0xff]
        %v1064 = vld [vmem:[%s257 + $0x168] sm:$0xff]
        %v1065 = vld [vmem:[%s257 + $0x170] sm:$0xff]
        %v1066 = vld [vmem:[%s257 + $0x178] sm:$0xff]
        %v1067 = vld [vmem:[%s257 + $0x180] sm:$0xff]
        %v1068 = vld [vmem:[%s257 + $0x188] sm:$0xff]
        %v1069 = vld [vmem:[%s257 + $0x190] sm:$0xff]
        %v1070 = vld [vmem:[%s257 + $0x198] sm:$0xff]
        %v1071 = vld [vmem:[%s257 + $0x1a0] sm:$0xff]
        %v1072 = vld [vmem:[%s257 + $0x1a8] sm:$0xff]
        %v1073 = vld [vmem:[%s257 + $0x1b0] sm:$0xff]
        %v1074 = vld [vmem:[%s257 + $0x1b8] sm:$0xff]
        %v1075 = vld [vmem:[%s257 + $0x1c0] sm:$0xff]
        %v1076 = vld [vmem:[%s257 + $0x1c8] sm:$0xff]
        %v1077 = vld [vmem:[%s257 + $0x1d0] sm:$0xff]
        %v1078 = vld [vmem:[%s257 + $0x1d8] sm:$0xff]
        %v1079 = vld [vmem:[%s257 + $0x1e0] sm:$0xff]
        %v1080 = vld [vmem:[%s257 + $0x1e8] sm:$0xff]
        %v1081 = vld [vmem:[%s257 + $0x1f0] sm:$0xff]
        %v1082 = vld [vmem:[%s257 + $0x1f8] sm:$0xff]
        %v1083 = vadd.f32 %v1019, %v1020
        %v1084 = vadd.f32 %v1083, %v1021
        %v1085 = vadd.f32 %v1084, %v1022
        %v1086 = vadd.f32 %v1085, %v1023
        %v1087 = vadd.f32 %v1086, %v1024
        %v1088 = vadd.f32 %v1087, %v1025
        %v1089 = vadd.f32 %v1088, %v1026
        %v1090 = vadd.f32 %v1089, %v1027
        %v1091 = vadd.f32 %v1090, %v1028
        %v1092 = vadd.f32 %v1091, %v1029
        %v1093 = vadd.f32 %v1092, %v1030
        %v1094 = vadd.f32 %v1093, %v1031
        %v1095 = vadd.f32 %v1094, %v1032
        %v1096 = vadd.f32 %v1095, %v1033
        %v1097 = vadd.f32 %v1096, %v1034
        %v1098 = vadd.f32 %v1097, %v1035
        %v1099 = vadd.f32 %v1098, %v1036
        %v1100 = vadd.f32 %v1099, %v1037
        %v1101 = vadd.f32 %v1100, %v1038
        %v1102 = vadd.f32 %v1101, %v1039
        %v1103 = vadd.f32 %v1102, %v1040
        %v1104 = vadd.f32 %v1103, %v1041
        %v1105 = vadd.f32 %v1104, %v1042
        %v1106 = vadd.f32 %v1105, %v1043
        %v1107 = vadd.f32 %v1106, %v1044
        %v1108 = vadd.f32 %v1107, %v1045
        %v1109 = vadd.f32 %v1108, %v1046
        %v1110 = vadd.f32 %v1109, %v1047
        %v1111 = vadd.f32 %v1110, %v1048
        %v1112 = vadd.f32 %v1111, %v1049
        %v1113 = vadd.f32 %v1112, %v1050
        %v1114 = vadd.f32 %v1113, %v1051
        %v1115 = vadd.f32 %v1114, %v1052
        %v1116 = vadd.f32 %v1115, %v1053
        %v1117 = vadd.f32 %v1116, %v1054
        %v1118 = vadd.f32 %v1117, %v1055
        %v1119 = vadd.f32 %v1118, %v1056
        %v1120 = vadd.f32 %v1119, %v1057
        %v1121 = vadd.f32 %v1120, %v1058
        %v1122 = vadd.f32 %v1121, %v1059
        %v1123 = vadd.f32 %v1122, %v1060
        %v1124 = vadd.f32 %v1123, %v1061
        %v1125 = vadd.f32 %v1124, %v1062
        %v1126 = vadd.f32 %v1125, %v1063
        %v1127 = vadd.f32 %v1126, %v1064
        %v1128 = vadd.f32 %v1127, %v1065
        %v1129 = vadd.f32 %v1128, %v1066
        %v1130 = vadd.f32 %v1129, %v1067
        %v1131 = vadd.f32 %v1130, %v1068
        %v1132 = vadd.f32 %v1131, %v1069
        %v1133 = vadd.f32 %v1132, %v1070
        %v1134 = vadd.f32 %v1133, %v1071
        %v1135 = vadd.f32 %v1134, %v1072
        %v1136 = vadd.f32 %v1135, %v1073
        %v1137 = vadd.f32 %v1136, %v1074
        %v1138 = vadd.f32 %v1137, %v1075
        %v1139 = vadd.f32 %v1138, %v1076
        %v1140 = vadd.f32 %v1139, %v1077
        %v1141 = vadd.f32 %v1140, %v1078
        %v1142 = vadd.f32 %v1141, %v1079
        %v1143 = vadd.f32 %v1142, %v1080
        %v1144 = vadd.f32 %v1143, %v1081
        %v1145 = vadd.f32 %v1144, %v1082
        %v1146 = vrot.slane %v1145, 4
        %v1147 = vadd.f32 %v1145, %v1146
        %v1148 = vrot.slane %v1147, 2
        %v1149 = vadd.f32 %v1147, %v1148
        %v1150 = vrot.slane %v1149, 1
        %v1151 = vadd.f32 %v1149, %v1150
        %v1152 = vmul.f32 %v1019, %v1019
        %v1153 = vmul.f32 %v1020, %v1020
        %v1154 = vmul.f32 %v1021, %v1021
        %v1155 = vmul.f32 %v1022, %v1022
        %v1156 = vmul.f32 %v1023, %v1023
        %v1157 = vmul.f32 %v1024, %v1024
        %v1158 = vmul.f32 %v1025, %v1025
        %v1159 = vmul.f32 %v1026, %v1026
        %v1160 = vmul.f32 %v1027, %v1027
        %v1161 = vmul.f32 %v1028, %v1028
        %v1162 = vmul.f32 %v1029, %v1029
        %v1163 = vmul.f32 %v1030, %v1030
        %v1164 = vmul.f32 %v1031, %v1031
        %v1165 = vmul.f32 %v1032, %v1032
        %v1166 = vmul.f32 %v1033, %v1033
        %v1167 = vmul.f32 %v1034, %v1034
        %v1168 = vmul.f32 %v1035, %v1035
        %v1169 = vmul.f32 %v1036, %v1036
        %v1170 = vmul.f32 %v1037, %v1037
        %v1171 = vmul.f32 %v1038, %v1038
        %v1172 = vmul.f32 %v1039, %v1039
        %v1173 = vmul.f32 %v1040, %v1040
        %v1174 = vmul.f32 %v1041, %v1041
        %v1175 = vmul.f32 %v1042, %v1042
        %v1176 = vmul.f32 %v1043, %v1043
        %v1177 = vmul.f32 %v1044, %v1044
        %v1178 = vmul.f32 %v1045, %v1045
        %v1179 = vmul.f32 %v1046, %v1046
        %v1180 = vmul.f32 %v1047, %v1047
        %v1181 = vmul.f32 %v1048, %v1048
        %v1182 = vmul.f32 %v1049, %v1049
        %v1183 = vmul.f32 %v1050, %v1050
        %v1184 = vmul.f32 %v1051, %v1051
        %v1185 = vmul.f32 %v1052, %v1052
        %v1186 = vmul.f32 %v1053, %v1053
        %v1187 = vmul.f32 %v1054, %v1054
        %v1188 = vmul.f32 %v1055, %v1055
        %v1189 = vmul.f32 %v1056, %v1056
        %v1190 = vmul.f32 %v1057, %v1057
        %v1191 = vmul.f32 %v1058, %v1058
        %v1192 = vmul.f32 %v1059, %v1059
        %v1193 = vmul.f32 %v1060, %v1060
        %v1194 = vmul.f32 %v1061, %v1061
        %v1195 = vmul.f32 %v1062, %v1062
        %v1196 = vmul.f32 %v1063, %v1063
        %v1197 = vmul.f32 %v1064, %v1064
        %v1198 = vmul.f32 %v1065, %v1065
        %v1199 = vmul.f32 %v1066, %v1066
        %v1200 = vmul.f32 %v1067, %v1067
        %v1201 = vmul.f32 %v1068, %v1068
        %v1202 = vmul.f32 %v1069, %v1069
        %v1203 = vmul.f32 %v1070, %v1070
        %v1204 = vmul.f32 %v1071, %v1071
        %v1205 = vmul.f32 %v1072, %v1072
        %v1206 = vmul.f32 %v1073, %v1073
        %v1207 = vmul.f32 %v1074, %v1074
        %v1208 = vmul.f32 %v1075, %v1075
        %v1209 = vmul.f32 %v1076, %v1076
        %v1210 = vmul.f32 %v1077, %v1077
        %v1211 = vmul.f32 %v1078, %v1078
        %v1212 = vmul.f32 %v1079, %v1079
        %v1213 = vmul.f32 %v1080, %v1080
        %v1214 = vmul.f32 %v1081, %v1081
        %v1215 = vmul.f32 %v1082, %v1082
        %v1216 = vadd.f32 %v1152, %v1153
        %v1217 = vadd.f32 %v1216, %v1154
        %v1218 = vadd.f32 %v1217, %v1155
        %v1219 = vadd.f32 %v1218, %v1156
        %v1220 = vadd.f32 %v1219, %v1157
        %v1221 = vadd.f32 %v1220, %v1158
        %v1222 = vadd.f32 %v1221, %v1159
        %v1223 = vadd.f32 %v1222, %v1160
        %v1224 = vadd.f32 %v1223, %v1161
        %v1225 = vadd.f32 %v1224, %v1162
        %v1226 = vadd.f32 %v1225, %v1163
        %v1227 = vadd.f32 %v1226, %v1164
        %v1228 = vadd.f32 %v1227, %v1165
        %v1229 = vadd.f32 %v1228, %v1166
        %v1230 = vadd.f32 %v1229, %v1167
        %v1231 = vadd.f32 %v1230, %v1168
        %v1232 = vadd.f32 %v1231, %v1169
        %v1233 = vadd.f32 %v1232, %v1170
        %v1234 = vadd.f32 %v1233, %v1171
        %v1235 = vadd.f32 %v1234, %v1172
        %v1236 = vadd.f32 %v1235, %v1173
        %v1237 = vadd.f32 %v1236, %v1174
        %v1238 = vadd.f32 %v1237, %v1175
        %v1239 = vadd.f32 %v1238, %v1176
        %v1240 = vadd.f32 %v1239, %v1177
        %v1241 = vadd.f32 %v1240, %v1178
        %v1242 = vadd.f32 %v1241, %v1179
        %v1243 = vadd.f32 %v1242, %v1180
        %v1244 = vadd.f32 %v1243, %v1181
        %v1245 = vadd.f32 %v1244, %v1182
        %v1246 = vadd.f32 %v1245, %v1183
        %v1247 = vadd.f32 %v1246, %v1184
        %v1248 = vadd.f32 %v1247, %v1185
        %v1249 = vadd.f32 %v1248, %v1186
        %v1250 = vadd.f32 %v1249, %v1187
        %v1251 = vadd.f32 %v1250, %v1188
        %v1252 = vadd.f32 %v1251, %v1189
        %v1253 = vadd.f32 %v1252, %v1190
        %v1254 = vadd.f32 %v1253, %v1191
        %v1255 = vadd.f32 %v1254, %v1192
        %v1256 = vadd.f32 %v1255, %v1193
        %v1257 = vadd.f32 %v1256, %v1194
        %v1258 = vadd.f32 %v1257, %v1195
        %v1259 = vadd.f32 %v1258, %v1196
        %v1260 = vadd.f32 %v1259, %v1197
        %v1261 = vadd.f32 %v1260, %v1198
        %v1262 = vadd.f32 %v1261, %v1199
        %v1263 = vadd.f32 %v1262, %v1200
        %v1264 = vadd.f32 %v1263, %v1201
        %v1265 = vadd.f32 %v1264, %v1202
        %v1266 = vadd.f32 %v1265, %v1203
        %v1267 = vadd.f32 %v1266, %v1204
        %v1268 = vadd.f32 %v1267, %v1205
        %v1269 = vadd.f32 %v1268, %v1206
        %v1270 = vadd.f32 %v1269, %v1207
        %v1271 = vadd.f32 %v1270, %v1208
        %v1272 = vadd.f32 %v1271, %v1209
        %v1273 = vadd.f32 %v1272, %v1210
        %v1274 = vadd.f32 %v1273, %v1211
        %v1275 = vadd.f32 %v1274, %v1212
        %v1276 = vadd.f32 %v1275, %v1213
        %v1277 = vadd.f32 %v1276, %v1214
        %v1278 = vadd.f32 %v1277, %v1215
        %v1279 = vrot.slane %v1278, 4
        %v1280 = vadd.f32 %v1278, %v1279
        %v1281 = vrot.slane %v1280, 2
        %v1282 = vadd.f32 %v1280, %v1281
        %v1283 = vrot.slane %v1282, 1
        %v1284 = vadd.f32 %v1282, %v1283
        %1285 = vst [vmem:[%s262] sm:$0xff] %v1151
        %1286 = vst [vmem:[%s266] sm:$0xff] %v1284
      $region36: #{_conv_layer.2} parent=27 // pred_fallthru
        _
      %s1287 = smul.u32 64, %s20
      %p1288 = scmp.lt.s32.totalorder %s1287, 1023
      %s1289 = scalar_select %p1288, %s1287, 1023
      %s1290 = smul.addr %s1289, 8
      %s1291 = scalar_lea.vmem %s2, %s1290
      %p1292 = scmp.lt.s32.totalorder %s20, 15
      %s1293 = scalar_select %p1292, %s20, 15
      %s1294 = smul.addr %s1293, 8
      %s1295 = scalar_lea.vmem %s3, %s1294
      %p1296 = scmp.lt.s32.totalorder %s20, 15
      %s1297 = scalar_select %p1296, %s20, 15
      %s1298 = smul.addr %s1297, 8
      %s1299 = scalar_lea.vmem %s4, %s1298
      // Predicated region
      $region37: #{_conv_layer.2} parent=27 // pred_check
        %p1300 = pneg %p100
      $region38: #{_conv_layer.2} parent=27 // pred_check_branch
        %1302 = sbr.rel (%p1300) target = $region40
      $region39: #{_conv_layer.2} parent=27 // pred_region
        %s1303 = smul.u32 64, %s20
      $region40: #{_conv_layer.2} parent=27 // pred_fallthru
        _
      // Predicated region
      $region41: #{_conv_layer.2} parent=27 // pred_check
        %p1304 = pneg %p126
      $region42: #{_conv_layer.2} parent=27 // pred_check_branch
        %1306 = sbr.rel (%p1304) target = $region44
      $region43: #{_conv_layer.2} parent=27 // pred_region
        _
      $region44: #{_conv_layer.2} parent=27 // pred_fallthru
        _
      // Predicated region
      $region45: #{_conv_layer.2} parent=27 // pred_check
        %p1307 = pneg %p152
      $region46: #{_conv_layer.2} parent=27 // pred_check_branch
        %1309 = sbr.rel (%p1307) target = $region48
      $region47: #{_conv_layer.2} parent=27 // pred_region
        _
      $region48: #{_conv_layer.2} parent=27 // pred_fallthru
        _
    $region28: #{_conv_layer.2} parent=5 // pred_fallthru
      _
    %p1310 = scmp.le.s32.totalorder 2, %s11
    // Predicated region
    $region49: #{_conv_layer.2} parent=5 // pred_check
      %p1311 = pneg %p1310
    $region50: #{_conv_layer.2} parent=5 // pred_check_branch
      %1313 = sbr.rel (%p1311) target = $region52
    $region51: #{_conv_layer.2} parent=5 // pred_region
      %s1314 = ssub.s32 %s11, 2
      // Predicated region
      $region53: #{_conv_layer.2} parent=51 // pred_check
        %p1315 = pneg %p106
      $region54: #{_conv_layer.2} parent=51 // pred_check_branch
        %1317 = sbr.rel (%p1315) target = $region56
      $region55: #{_conv_layer.2} parent=51 // pred_region
        %s1318 = smul.u32 64, %s22
        %p1319 = scmp.lt.s32.totalorder %s1318, 1023
        %s1320 = scalar_select %p1319, %s1318, 1023
        %s1321 = smul.addr %s1320, 8
        %s1322 = scalar_lea.vmem %s2, %s1321
      $region56: #{_conv_layer.2} parent=51 // pred_fallthru
        _
      // Predicated region
      $region57: #{_conv_layer.2} parent=51 // pred_check
        %p1323 = pneg %p132
      $region58: #{_conv_layer.2} parent=51 // pred_check_branch
        %1325 = sbr.rel (%p1323) target = $region60
      $region59: #{_conv_layer.2} parent=51 // pred_region
        %p1326 = scmp.lt.s32.totalorder %s22, 15
        %s1327 = scalar_select %p1326, %s22, 15
        %s1328 = smul.addr %s1327, 8
        %s1329 = scalar_lea.vmem %s3, %s1328
      $region60: #{_conv_layer.2} parent=51 // pred_fallthru
        _
      // Predicated region
      $region61: #{_conv_layer.2} parent=51 // pred_check
        %p1330 = pneg %p158
      $region62: #{_conv_layer.2} parent=51 // pred_check_branch
        %1332 = sbr.rel (%p1330) target = $region64
      $region63: #{_conv_layer.2} parent=51 // pred_region
        %p1333 = scmp.lt.s32.totalorder %s22, 15
        %s1334 = scalar_select %p1333, %s22, 15
        %s1335 = smul.addr %s1334, 8
        %s1336 = scalar_lea.vmem %s4, %s1335
      $region64: #{_conv_layer.2} parent=51 // pred_fallthru
        _
    $region52: #{_conv_layer.2} parent=5 // pred_fallthru
      _
  $region6: #{_conv_layer.2} parent=0 // loop_footer
    %s15 = sadd.s32 1, %s11
  $region7: #{_conv_layer.2} parent=0 // loop_footer_branch
    %10 = sbr.rel target = $region3
  $region8: #{_conv_layer.2} parent=0 // loop_exit
    _

// kernel: _conv_layer.3
$region0: #{_conv_layer.3}
  #allocation0 [shape = 'u32[]', space=smem, size = 0x4, offset = 0x4, fixed_abs, tag = 'smem constant byte address 0x4 - core index']
  #allocation1 [shape = 'u32[72,128]{1,0:T(1,128)}', space=vmem, size = 0x9000, scoped, tag = 'internal scratch']
  %s0 = inlined_call_operand.vmem [shape: f32[8192,128], index: 0, kind: input, shape index: {}]
  %s1 = inlined_call_operand.vmem [shape: f32[1,32], index: 1, kind: input, shape index: {}]
  %s2 = inlined_call_operand.vmem [shape: f32[1,32], index: 2, kind: input, shape index: {}]
  %s3 = inlined_call_operand.vmem [shape: f32[8192,32], index: 3, kind: output, shape index: {}]
  %s4 = sld [smem:[#allocation0]]
  $region45: #{_conv_layer.3} parent=0
    _
  %s6 = ssub.s32 1, %s4
  %s7 = scalar_select 0, %s6, %s4
  loop: start=0, step=1, limit=18
  $region2: #{_conv_layer.3} parent=0 // loop_pre_header
    _
  $region3: #{_conv_layer.3} parent=0 // loop_header
    %s9 = sphi 0, %s13
    %p10 = scmp.ge.s32.totalorder %s9, 18
    %s19 = sphi 0, %s21
    %s22 = sphi 0, %s19
    %s23 = sphi 0, %s22
    %s39 = sphi 0, %s23
    %s43 = sphi 0, %s43
    %s45 = sphi 0, %s43
    %s46 = sphi 0, %s45
    %s60 = sphi 0, %s46
    %s64 = sphi 0, %s64
    %s66 = sphi 0, %s64
    %s67 = sphi 0, %s66
    %s81 = sphi 0, %s67
    %s87 = sphi 0, %s89
    %s90 = sphi 0, %s87
    %s91 = sphi 0, %s90
    %s107 = sphi 0, %s91
  $region4: #{_conv_layer.3} parent=0 // loop_header_branch
    %12 = sbr.rel (%p10) target = $region8
  $region5: #{_conv_layer.3} parent=0 // loop_body
    %s14 = ssub.s32 %s9, 1
    %s15 = ssub.s32 %s9, 2
    %s16 = sadd.s32 %s9, 1
    %s17 = ssub.s32 %s9, %s16
    %p18 = scmp.eq.s32.totalorder %s17, 0
    %s20 = sadd.s32 %s19, 1
    %s21 = scalar_select %p18, %s19, %s20
    %p24 = pneg %p18
    %p25 = scmp.eq.s32.totalorder %s9, 15
    %p26 = por %p24, %p25
    %p27 = scmp.ne.s32.totalorder %s19, %s22
    %p28 = scmp.eq.s32.totalorder %s9, 0
    %p29 = por %p27, %p28
    %p30 = scmp.ne.s32.totalorder %s19, %s22
    %p31 = scmp.eq.s32.totalorder %s14, 15
    %p32 = por %p30, %p31
    %p33 = scmp.ne.s32.totalorder %s22, %s23
    %p34 = scmp.eq.s32.totalorder %s14, 0
    %p35 = por %p33, %p34
    %p36 = scmp.ne.s32.totalorder %s22, %s23
    %p37 = scmp.eq.s32.totalorder %s15, 15
    %p38 = por %p36, %p37
    %p40 = scmp.ne.s32.totalorder %s23, %s39
    %p41 = scmp.eq.s32.totalorder %s15, 0
    %p42 = por %p40, %p41
    %s44 = sadd.s32 %s43, 1
    %p47 = scmp.eq.s32.totalorder %s9, 15
    %p48 = scmp.ne.s32.totalorder %s43, %s45
    %p49 = scmp.eq.s32.totalorder %s9, 0
    %p50 = por %p48, %p49
    %p51 = scmp.ne.s32.totalorder %s43, %s45
    %p52 = scmp.eq.s32.totalorder %s14, 15
    %p53 = por %p51, %p52
    %p54 = scmp.ne.s32.totalorder %s45, %s46
    %p55 = scmp.eq.s32.totalorder %s14, 0
    %p56 = por %p54, %p55
    %p57 = scmp.ne.s32.totalorder %s45, %s46
    %p58 = scmp.eq.s32.totalorder %s15, 15
    %p59 = por %p57, %p58
    %p61 = scmp.ne.s32.totalorder %s46, %s60
    %p62 = scmp.eq.s32.totalorder %s15, 0
    %p63 = por %p61, %p62
    %s65 = sadd.s32 %s64, 1
    %p68 = scmp.eq.s32.totalorder %s9, 15
    %p69 = scmp.ne.s32.totalorder %s64, %s66
    %p70 = scmp.eq.s32.totalorder %s9, 0
    %p71 = por %p69, %p70
    %p72 = scmp.ne.s32.totalorder %s64, %s66
    %p73 = scmp.eq.s32.totalorder %s14, 15
    %p74 = por %p72, %p73
    %p75 = scmp.ne.s32.totalorder %s66, %s67
    %p76 = scmp.eq.s32.totalorder %s14, 0
    %p77 = por %p75, %p76
    %p78 = scmp.ne.s32.totalorder %s66, %s67
    %p79 = scmp.eq.s32.totalorder %s15, 15
    %p80 = por %p78, %p79
    %p82 = scmp.ne.s32.totalorder %s67, %s81
    %p83 = scmp.eq.s32.totalorder %s15, 0
    %p84 = por %p82, %p83
    %s85 = ssub.s32 %s9, %s16
    %p86 = scmp.eq.s32.totalorder %s85, 0
    %s88 = sadd.s32 %s87, 1
    %s89 = scalar_select %p86, %s87, %s88
    %p92 = pneg %p86
    %p93 = scmp.eq.s32.totalorder %s9, 15
    %p94 = por %p92, %p93
    %p95 = scmp.ne.s32.totalorder %s87, %s90
    %p96 = scmp.eq.s32.totalorder %s9, 0
    %p97 = por %p95, %p96
    %p98 = scmp.ne.s32.totalorder %s87, %s90
    %p99 = scmp.eq.s32.totalorder %s14, 15
    %p100 = por %p98, %p99
    %p101 = scmp.ne.s32.totalorder %s90, %s91
    %p102 = scmp.eq.s32.totalorder %s14, 0
    %p103 = por %p101, %p102
    %p104 = scmp.ne.s32.totalorder %s90, %s91
    %p105 = scmp.eq.s32.totalorder %s15, 15
    %p106 = por %p104, %p105
    %p108 = scmp.ne.s32.totalorder %s91, %s107
    %p109 = scmp.eq.s32.totalorder %s15, 0
    %p110 = por %p108, %p109
    %p111 = scmp.le.s32.totalorder 1, %s9
    %p112 = scmp.lt.s32.totalorder %s9, 17
    %p113 = pnand %p111, %p112
    %p114 = pneg %p113
    // Predicated region
    $region9: #{_conv_layer.3} parent=5 // pred_check
      _
    $region10: #{_conv_layer.3} parent=5 // pred_check_branch
      %116 = sbr.rel (%p113) target = $region12
    $region11: #{_conv_layer.3} parent=5 // pred_region
      %s117 = ssub.s32 %s9, 1
      // Predicated region
      $region13: #{_conv_layer.3} parent=11 // pred_check
        %p118 = pneg %p56
      $region14: #{_conv_layer.3} parent=11 // pred_check_branch
        %120 = sbr.rel (%p118) target = $region16
      $region15: #{_conv_layer.3} parent=11 // pred_region
        _
      $region16: #{_conv_layer.3} parent=11 // pred_fallthru
        _
      // Predicated region
      $region17: #{_conv_layer.3} parent=11 // pred_check
        %p121 = pneg %p77
      $region18: #{_conv_layer.3} parent=11 // pred_check_branch
        %123 = sbr.rel (%p121) target = $region20
      $region19: #{_conv_layer.3} parent=11 // pred_region
        _
      $region20: #{_conv_layer.3} parent=11 // pred_fallthru
        _
    $region12: #{_conv_layer.3} parent=5 // pred_fallthru
      _
    %p124 = scmp.lt.s32.totalorder %s9, 16
    // Predicated region
    $region21: #{_conv_layer.3} parent=5 // pred_check
      %p125 = pneg %p124
    $region22: #{_conv_layer.3} parent=5 // pred_check_branch
      %127 = sbr.rel (%p125) target = $region24
    $region23: #{_conv_layer.3} parent=5 // pred_region
      // Predicated region
      $region25: #{_conv_layer.3} parent=23 // pred_check
        %p128 = pneg %p29
      $region26: #{_conv_layer.3} parent=23 // pred_check_branch
        %130 = sbr.rel (%p128) target = $region28
      $region27: #{_conv_layer.3} parent=23 // pred_region
        %s131 = smul.u32 64, %s9
        %p132 = scmp.lt.s32.totalorder %s131, 1023
        %s133 = scalar_select %p132, %s131, 1023
        %s134 = smul.addr %s133, 8
        %s135 = scalar_lea.vmem %s0, %s134
        %s136 = smul.u32 64, %s9
      $region28: #{_conv_layer.3} parent=23 // pred_fallthru
        _
    $region24: #{_conv_layer.3} parent=5 // pred_fallthru
      _
    %p137 = scmp.le.s32.totalorder 1, %s9
    %p138 = scmp.lt.s32.totalorder %s9, 17
    %p139 = pnand %p137, %p138
    %p140 = pneg %p139
    // Predicated region
    $region29: #{_conv_layer.3} parent=5 // pred_check
      _
    $region30: #{_conv_layer.3} parent=5 // pred_check_branch
      %142 = sbr.rel (%p139) target = $region32
    $region31: #{_conv_layer.3} parent=5 // pred_region
      %s143 = ssub.s32 %s9, 1
      %s144 = smul.u32 64, %s14
      %p145 = scmp.lt.s32.totalorder %s144, 1023
      %s146 = scalar_select %p145, %s144, 1023
      %s147 = smul.addr %s146, 8
      %s148 = scalar_lea.vmem %s0, %s147
      %p149 = pneg %p35
      %p150 = pneg %p32
      %p151 = pneg %p56
      %p152 = pneg %p53
      %p153 = pneg %p77
      %p154 = pneg %p74
      %p155 = pneg %p103
      %p156 = pneg %p100
      %s157 = smul.u32 64, %s14
      %p158 = scmp.lt.s32.totalorder %s157, 1023
      %s159 = scalar_select %p158, %s157, 1023
      %s160 = smul.addr %s159, 8
      %s161 = scalar_lea.vmem %s3, %s160
      %s162 = smul.u32 64, %s14
      %p163 = scmp.lt.s32.totalorder %s162, 1023
      %s164 = scalar_select %p163, %s162, 1023
      %s165 = smul.addr %s164, 8
      %s166 = scalar_lea.vmem %s0, %s165
      %s167 = smul.u32 64, %s14
      %s168 = smul.u32 64, %s14
      %p169 = scmp.lt.s32.totalorder %s168, 1023
      %s170 = scalar_select %p169, %s168, 1023
      %s171 = smul.addr %s170, 8
      %s172 = scalar_lea.vmem %s3, %s171
      %s173 = smul.u32 64, %s14
      %v174 = vld [vmem:[%s166] sm:$0xff]
      %v175 = vld [vmem:[%s166 + $0x8] sm:$0xff]
      %v176 = vld [vmem:[%s166 + $0x10] sm:$0xff]
      %v177 = vld [vmem:[%s166 + $0x18] sm:$0xff]
      %v178 = vld [vmem:[%s166 + $0x20] sm:$0xff]
      %v179 = vld [vmem:[%s166 + $0x28] sm:$0xff]
      %v180 = vld [vmem:[%s166 + $0x30] sm:$0xff]
      %v181 = vld [vmem:[%s166 + $0x38] sm:$0xff]
      %v182 = vld [vmem:[%s166 + $0x40] sm:$0xff]
      %v183 = vld [vmem:[%s166 + $0x48] sm:$0xff]
      %v184 = vld [vmem:[%s166 + $0x50] sm:$0xff]
      %v185 = vld [vmem:[%s166 + $0x58] sm:$0xff]
      %v186 = vld [vmem:[%s166 + $0x60] sm:$0xff]
      %v187 = vld [vmem:[%s166 + $0x68] sm:$0xff]
      %v188 = vld [vmem:[%s166 + $0x70] sm:$0xff]
      %v189 = vld [vmem:[%s166 + $0x78] sm:$0xff]
      %v190 = vld [vmem:[%s166 + $0x80] sm:$0xff]
      %v191 = vld [vmem:[%s166 + $0x88] sm:$0xff]
      %v192 = vld [vmem:[%s166 + $0x90] sm:$0xff]
      %v193 = vld [vmem:[%s166 + $0x98] sm:$0xff]
      %v194 = vld [vmem:[%s166 + $0xa0] sm:$0xff]
      %v195 = vld [vmem:[%s166 + $0xa8] sm:$0xff]
      %v196 = vld [vmem:[%s166 + $0xb0] sm:$0xff]
      %v197 = vld [vmem:[%s166 + $0xb8] sm:$0xff]
      %v198 = vld [vmem:[%s166 + $0xc0] sm:$0xff]
      %v199 = vld [vmem:[%s166 + $0xc8] sm:$0xff]
      %v200 = vld [vmem:[%s166 + $0xd0] sm:$0xff]
      %v201 = vld [vmem:[%s166 + $0xd8] sm:$0xff]
      %v202 = vld [vmem:[%s166 + $0xe0] sm:$0xff]
      %v203 = vld [vmem:[%s166 + $0xe8] sm:$0xff]
      %v204 = vld [vmem:[%s166 + $0xf0] sm:$0xff]
      %v205 = vld [vmem:[%s166 + $0xf8] sm:$0xff]
      %v206 = vld [vmem:[%s166 + $0x100] sm:$0xff]
      %v207 = vld [vmem:[%s166 + $0x108] sm:$0xff]
      %v208 = vld [vmem:[%s166 + $0x110] sm:$0xff]
      %v209 = vld [vmem:[%s166 + $0x118] sm:$0xff]
      %v210 = vld [vmem:[%s166 + $0x120] sm:$0xff]
      %v211 = vld [vmem:[%s166 + $0x128] sm:$0xff]
      %v212 = vld [vmem:[%s166 + $0x130] sm:$0xff]
      %v213 = vld [vmem:[%s166 + $0x138] sm:$0xff]
      %v214 = vld [vmem:[%s166 + $0x140] sm:$0xff]
      %v215 = vld [vmem:[%s166 + $0x148] sm:$0xff]
      %v216 = vld [vmem:[%s166 + $0x150] sm:$0xff]
      %v217 = vld [vmem:[%s166 + $0x158] sm:$0xff]
      %v218 = vld [vmem:[%s166 + $0x160] sm:$0xff]
      %v219 = vld [vmem:[%s166 + $0x168] sm:$0xff]
      %v220 = vld [vmem:[%s166 + $0x170] sm:$0xff]
      %v221 = vld [vmem:[%s166 + $0x178] sm:$0xff]
      %v222 = vld [vmem:[%s166 + $0x180] sm:$0xff]
      %v223 = vld [vmem:[%s166 + $0x188] sm:$0xff]
      %v224 = vld [vmem:[%s166 + $0x190] sm:$0xff]
      %v225 = vld [vmem:[%s166 + $0x198] sm:$0xff]
      %v226 = vld [vmem:[%s166 + $0x1a0] sm:$0xff]
      %v227 = vld [vmem:[%s166 + $0x1a8] sm:$0xff]
      %v228 = vld [vmem:[%s166 + $0x1b0] sm:$0xff]
      %v229 = vld [vmem:[%s166 + $0x1b8] sm:$0xff]
      %v230 = vld [vmem:[%s166 + $0x1c0] sm:$0xff]
      %v231 = vld [vmem:[%s166 + $0x1c8] sm:$0xff]
      %v232 = vld [vmem:[%s166 + $0x1d0] sm:$0xff]
      %v233 = vld [vmem:[%s166 + $0x1d8] sm:$0xff]
      %v234 = vld [vmem:[%s166 + $0x1e0] sm:$0xff]
      %v235 = vld [vmem:[%s166 + $0x1e8] sm:$0xff]
      %v236 = vld [vmem:[%s166 + $0x1f0] sm:$0xff]
      %v237 = vld [vmem:[%s166 + $0x1f8] sm:$0xff]
      %v238 = vld [vmem:[%s1] sm:$0x1]
      %v240 = vperm.slane %v238, 0
      %v242 = vmul.f32 %v174, %v240
      %v243 = vmul.f32 %v175, %v240
      %v244 = vmul.f32 %v176, %v240
      %v245 = vmul.f32 %v177, %v240
      %v246 = vmul.f32 %v178, %v240
      %v247 = vmul.f32 %v179, %v240
      %v248 = vmul.f32 %v180, %v240
      %v249 = vmul.f32 %v181, %v240
      %v250 = vmul.f32 %v182, %v240
      %v251 = vmul.f32 %v183, %v240
      %v252 = vmul.f32 %v184, %v240
      %v253 = vmul.f32 %v185, %v240
      %v254 = vmul.f32 %v186, %v240
      %v255 = vmul.f32 %v187, %v240
      %v256 = vmul.f32 %v188, %v240
      %v257 = vmul.f32 %v189, %v240
      %v258 = vmul.f32 %v190, %v240
      %v259 = vmul.f32 %v191, %v240
      %v260 = vmul.f32 %v192, %v240
      %v261 = vmul.f32 %v193, %v240
      %v262 = vmul.f32 %v194, %v240
      %v263 = vmul.f32 %v195, %v240
      %v264 = vmul.f32 %v196, %v240
      %v265 = vmul.f32 %v197, %v240
      %v266 = vmul.f32 %v198, %v240
      %v267 = vmul.f32 %v199, %v240
      %v268 = vmul.f32 %v200, %v240
      %v269 = vmul.f32 %v201, %v240
      %v270 = vmul.f32 %v202, %v240
      %v271 = vmul.f32 %v203, %v240
      %v272 = vmul.f32 %v204, %v240
      %v273 = vmul.f32 %v205, %v240
      %v274 = vmul.f32 %v206, %v240
      %v275 = vmul.f32 %v207, %v240
      %v276 = vmul.f32 %v208, %v240
      %v277 = vmul.f32 %v209, %v240
      %v278 = vmul.f32 %v210, %v240
      %v279 = vmul.f32 %v211, %v240
      %v280 = vmul.f32 %v212, %v240
      %v281 = vmul.f32 %v213, %v240
      %v282 = vmul.f32 %v214, %v240
      %v283 = vmul.f32 %v215, %v240
      %v284 = vmul.f32 %v216, %v240
      %v285 = vmul.f32 %v217, %v240
      %v286 = vmul.f32 %v218, %v240
      %v287 = vmul.f32 %v219, %v240
      %v288 = vmul.f32 %v220, %v240
      %v289 = vmul.f32 %v221, %v240
      %v290 = vmul.f32 %v222, %v240
      %v291 = vmul.f32 %v223, %v240
      %v292 = vmul.f32 %v224, %v240
      %v293 = vmul.f32 %v225, %v240
      %v294 = vmul.f32 %v226, %v240
      %v295 = vmul.f32 %v227, %v240
      %v296 = vmul.f32 %v228, %v240
      %v297 = vmul.f32 %v229, %v240
      %v298 = vmul.f32 %v230, %v240
      %v299 = vmul.f32 %v231, %v240
      %v300 = vmul.f32 %v232, %v240
      %v301 = vmul.f32 %v233, %v240
      %v302 = vmul.f32 %v234, %v240
      %v303 = vmul.f32 %v235, %v240
      %v304 = vmul.f32 %v236, %v240
      %v305 = vmul.f32 %v237, %v240
      %v306 = vld [vmem:[%s2] sm:$0x1]
      %v308 = vperm.slane %v306, 0
      %v310 = vadd.f32 %v242, %v308
      %v311 = vadd.f32 %v243, %v308
      %v312 = vadd.f32 %v244, %v308
      %v313 = vadd.f32 %v245, %v308
      %v314 = vadd.f32 %v246, %v308
      %v315 = vadd.f32 %v247, %v308
      %v316 = vadd.f32 %v248, %v308
      %v317 = vadd.f32 %v249, %v308
      %v318 = vadd.f32 %v250, %v308
      %v319 = vadd.f32 %v251, %v308
      %v320 = vadd.f32 %v252, %v308
      %v321 = vadd.f32 %v253, %v308
      %v322 = vadd.f32 %v254, %v308
      %v323 = vadd.f32 %v255, %v308
      %v324 = vadd.f32 %v256, %v308
      %v325 = vadd.f32 %v257, %v308
      %v326 = vadd.f32 %v258, %v308
      %v327 = vadd.f32 %v259, %v308
      %v328 = vadd.f32 %v260, %v308
      %v329 = vadd.f32 %v261, %v308
      %v330 = vadd.f32 %v262, %v308
      %v331 = vadd.f32 %v263, %v308
      %v332 = vadd.f32 %v264, %v308
      %v333 = vadd.f32 %v265, %v308
      %v334 = vadd.f32 %v266, %v308
      %v335 = vadd.f32 %v267, %v308
      %v336 = vadd.f32 %v268, %v308
      %v337 = vadd.f32 %v269, %v308
      %v338 = vadd.f32 %v270, %v308
      %v339 = vadd.f32 %v271, %v308
      %v340 = vadd.f32 %v272, %v308
      %v341 = vadd.f32 %v273, %v308
      %v342 = vadd.f32 %v274, %v308
      %v343 = vadd.f32 %v275, %v308
      %v344 = vadd.f32 %v276, %v308
      %v345 = vadd.f32 %v277, %v308
      %v346 = vadd.f32 %v278, %v308
      %v347 = vadd.f32 %v279, %v308
      %v348 = vadd.f32 %v280, %v308
      %v349 = vadd.f32 %v281, %v308
      %v350 = vadd.f32 %v282, %v308
      %v351 = vadd.f32 %v283, %v308
      %v352 = vadd.f32 %v284, %v308
      %v353 = vadd.f32 %v285, %v308
      %v354 = vadd.f32 %v286, %v308
      %v355 = vadd.f32 %v287, %v308
      %v356 = vadd.f32 %v288, %v308
      %v357 = vadd.f32 %v289, %v308
      %v358 = vadd.f32 %v290, %v308
      %v359 = vadd.f32 %v291, %v308
      %v360 = vadd.f32 %v292, %v308
      %v361 = vadd.f32 %v293, %v308
      %v362 = vadd.f32 %v294, %v308
      %v363 = vadd.f32 %v295, %v308
      %v364 = vadd.f32 %v296, %v308
      %v365 = vadd.f32 %v297, %v308
      %v366 = vadd.f32 %v298, %v308
      %v367 = vadd.f32 %v299, %v308
      %v368 = vadd.f32 %v300, %v308
      %v369 = vadd.f32 %v301, %v308
      %v370 = vadd.f32 %v302, %v308
      %v371 = vadd.f32 %v303, %v308
      %v372 = vadd.f32 %v304, %v308
      %v373 = vadd.f32 %v305, %v308
      %vm374 = vcmp.gt.f32.partialorder %v310, 0.0
      %vm375 = vcmp.gt.f32.partialorder %v311, 0.0
      %vm376 = vcmp.gt.f32.partialorder %v312, 0.0
      %vm377 = vcmp.gt.f32.partialorder %v313, 0.0
      %vm378 = vcmp.gt.f32.partialorder %v314, 0.0
      %vm379 = vcmp.gt.f32.partialorder %v315, 0.0
      %vm380 = vcmp.gt.f32.partialorder %v316, 0.0
      %vm381 = vcmp.gt.f32.partialorder %v317, 0.0
      %vm382 = vcmp.gt.f32.partialorder %v318, 0.0
      %vm383 = vcmp.gt.f32.partialorder %v319, 0.0
      %vm384 = vcmp.gt.f32.partialorder %v320, 0.0
      %vm385 = vcmp.gt.f32.partialorder %v321, 0.0
      %vm386 = vcmp.gt.f32.partialorder %v322, 0.0
      %vm387 = vcmp.gt.f32.partialorder %v323, 0.0
      %vm388 = vcmp.gt.f32.partialorder %v324, 0.0
      %vm389 = vcmp.gt.f32.partialorder %v325, 0.0
      %vm390 = vcmp.gt.f32.partialorder %v326, 0.0
      %vm391 = vcmp.gt.f32.partialorder %v327, 0.0
      %vm392 = vcmp.gt.f32.partialorder %v328, 0.0
      %vm393 = vcmp.gt.f32.partialorder %v329, 0.0
      %vm394 = vcmp.gt.f32.partialorder %v330, 0.0
      %vm395 = vcmp.gt.f32.partialorder %v331, 0.0
      %vm396 = vcmp.gt.f32.partialorder %v332, 0.0
      %vm397 = vcmp.gt.f32.partialorder %v333, 0.0
      %vm398 = vcmp.gt.f32.partialorder %v334, 0.0
      %vm399 = vcmp.gt.f32.partialorder %v335, 0.0
      %vm400 = vcmp.gt.f32.partialorder %v336, 0.0
      %vm401 = vcmp.gt.f32.partialorder %v337, 0.0
      %vm402 = vcmp.gt.f32.partialorder %v338, 0.0
      %vm403 = vcmp.gt.f32.partialorder %v339, 0.0
      %vm404 = vcmp.gt.f32.partialorder %v340, 0.0
      %vm405 = vcmp.gt.f32.partialorder %v341, 0.0
      %vm406 = vcmp.gt.f32.partialorder %v342, 0.0
      %vm407 = vcmp.gt.f32.partialorder %v343, 0.0
      %vm408 = vcmp.gt.f32.partialorder %v344, 0.0
      %vm409 = vcmp.gt.f32.partialorder %v345, 0.0
      %vm410 = vcmp.gt.f32.partialorder %v346, 0.0
      %vm411 = vcmp.gt.f32.partialorder %v347, 0.0
      %vm412 = vcmp.gt.f32.partialorder %v348, 0.0
      %vm413 = vcmp.gt.f32.partialorder %v349, 0.0
      %vm414 = vcmp.gt.f32.partialorder %v350, 0.0
      %vm415 = vcmp.gt.f32.partialorder %v351, 0.0
      %vm416 = vcmp.gt.f32.partialorder %v352, 0.0
      %vm417 = vcmp.gt.f32.partialorder %v353, 0.0
      %vm418 = vcmp.gt.f32.partialorder %v354, 0.0
      %vm419 = vcmp.gt.f32.partialorder %v355, 0.0
      %vm420 = vcmp.gt.f32.partialorder %v356, 0.0
      %vm421 = vcmp.gt.f32.partialorder %v357, 0.0
      %vm422 = vcmp.gt.f32.partialorder %v358, 0.0
      %vm423 = vcmp.gt.f32.partialorder %v359, 0.0
      %vm424 = vcmp.gt.f32.partialorder %v360, 0.0
      %vm425 = vcmp.gt.f32.partialorder %v361, 0.0
      %vm426 = vcmp.gt.f32.partialorder %v362, 0.0
      %vm427 = vcmp.gt.f32.partialorder %v363, 0.0
      %vm428 = vcmp.gt.f32.partialorder %v364, 0.0
      %vm429 = vcmp.gt.f32.partialorder %v365, 0.0
      %vm430 = vcmp.gt.f32.partialorder %v366, 0.0
      %vm431 = vcmp.gt.f32.partialorder %v367, 0.0
      %vm432 = vcmp.gt.f32.partialorder %v368, 0.0
      %vm433 = vcmp.gt.f32.partialorder %v369, 0.0
      %vm434 = vcmp.gt.f32.partialorder %v370, 0.0
      %vm435 = vcmp.gt.f32.partialorder %v371, 0.0
      %vm436 = vcmp.gt.f32.partialorder %v372, 0.0
      %vm437 = vcmp.gt.f32.partialorder %v373, 0.0
      %v438 = vmul.f32 %v310, 0.1
      %v439 = vmul.f32 %v311, 0.1
      %v440 = vmul.f32 %v312, 0.1
      %v441 = vmul.f32 %v313, 0.1
      %v442 = vmul.f32 %v314, 0.1
      %v443 = vmul.f32 %v315, 0.1
      %v444 = vmul.f32 %v316, 0.1
      %v445 = vmul.f32 %v317, 0.1
      %v446 = vmul.f32 %v318, 0.1
      %v447 = vmul.f32 %v319, 0.1
      %v448 = vmul.f32 %v320, 0.1
      %v449 = vmul.f32 %v321, 0.1
      %v450 = vmul.f32 %v322, 0.1
      %v451 = vmul.f32 %v323, 0.1
      %v452 = vmul.f32 %v324, 0.1
      %v453 = vmul.f32 %v325, 0.1
      %v454 = vmul.f32 %v326, 0.1
      %v455 = vmul.f32 %v327, 0.1
      %v456 = vmul.f32 %v328, 0.1
      %v457 = vmul.f32 %v329, 0.1
      %v458 = vmul.f32 %v330, 0.1
      %v459 = vmul.f32 %v331, 0.1
      %v460 = vmul.f32 %v332, 0.1
      %v461 = vmul.f32 %v333, 0.1
      %v462 = vmul.f32 %v334, 0.1
      %v463 = vmul.f32 %v335, 0.1
      %v464 = vmul.f32 %v336, 0.1
      %v465 = vmul.f32 %v337, 0.1
      %v466 = vmul.f32 %v338, 0.1
      %v467 = vmul.f32 %v339, 0.1
      %v468 = vmul.f32 %v340, 0.1
      %v469 = vmul.f32 %v341, 0.1
      %v470 = vmul.f32 %v342, 0.1
      %v471 = vmul.f32 %v343, 0.1
      %v472 = vmul.f32 %v344, 0.1
      %v473 = vmul.f32 %v345, 0.1
      %v474 = vmul.f32 %v346, 0.1
      %v475 = vmul.f32 %v347, 0.1
      %v476 = vmul.f32 %v348, 0.1
      %v477 = vmul.f32 %v349, 0.1
      %v478 = vmul.f32 %v350, 0.1
      %v479 = vmul.f32 %v351, 0.1
      %v480 = vmul.f32 %v352, 0.1
      %v481 = vmul.f32 %v353, 0.1
      %v482 = vmul.f32 %v354, 0.1
      %v483 = vmul.f32 %v355, 0.1
      %v484 = vmul.f32 %v356, 0.1
      %v485 = vmul.f32 %v357, 0.1
      %v486 = vmul.f32 %v358, 0.1
      %v487 = vmul.f32 %v359, 0.1
      %v488 = vmul.f32 %v360, 0.1
      %v489 = vmul.f32 %v361, 0.1
      %v490 = vmul.f32 %v362, 0.1
      %v491 = vmul.f32 %v363, 0.1
      %v492 = vmul.f32 %v364, 0.1
      %v493 = vmul.f32 %v365, 0.1
      %v494 = vmul.f32 %v366, 0.1
      %v495 = vmul.f32 %v367, 0.1
      %v496 = vmul.f32 %v368, 0.1
      %v497 = vmul.f32 %v369, 0.1
      %v498 = vmul.f32 %v370, 0.1
      %v499 = vmul.f32 %v371, 0.1
      %v500 = vmul.f32 %v372, 0.1
      %v501 = vmul.f32 %v373, 0.1
      %v502 = vsel %vm374, %v310, %v438
      %v503 = vsel %vm375, %v311, %v439
      %v504 = vsel %vm376, %v312, %v440
      %v505 = vsel %vm377, %v313, %v441
      %v506 = vsel %vm378, %v314, %v442
      %v507 = vsel %vm379, %v315, %v443
      %v508 = vsel %vm380, %v316, %v444
      %v509 = vsel %vm381, %v317, %v445
      %v510 = vsel %vm382, %v318, %v446
      %v511 = vsel %vm383, %v319, %v447
      %v512 = vsel %vm384, %v320, %v448
      %v513 = vsel %vm385, %v321, %v449
      %v514 = vsel %vm386, %v322, %v450
      %v515 = vsel %vm387, %v323, %v451
      %v516 = vsel %vm388, %v324, %v452
      %v517 = vsel %vm389, %v325, %v453
      %v518 = vsel %vm390, %v326, %v454
      %v519 = vsel %vm391, %v327, %v455
      %v520 = vsel %vm392, %v328, %v456
      %v521 = vsel %vm393, %v329, %v457
      %v522 = vsel %vm394, %v330, %v458
      %v523 = vsel %vm395, %v331, %v459
      %v524 = vsel %vm396, %v332, %v460
      %v525 = vsel %vm397, %v333, %v461
      %v526 = vsel %vm398, %v334, %v462
      %v527 = vsel %vm399, %v335, %v463
      %v528 = vsel %vm400, %v336, %v464
      %v529 = vsel %vm401, %v337, %v465
      %v530 = vsel %vm402, %v338, %v466
      %v531 = vsel %vm403, %v339, %v467
      %v532 = vsel %vm404, %v340, %v468
      %v533 = vsel %vm405, %v341, %v469
      %v534 = vsel %vm406, %v342, %v470
      %v535 = vsel %vm407, %v343, %v471
      %v536 = vsel %vm408, %v344, %v472
      %v537 = vsel %vm409, %v345, %v473
      %v538 = vsel %vm410, %v346, %v474
      %v539 = vsel %vm411, %v347, %v475
      %v540 = vsel %vm412, %v348, %v476
      %v541 = vsel %vm413, %v349, %v477
      %v542 = vsel %vm414, %v350, %v478
      %v543 = vsel %vm415, %v351, %v479
      %v544 = vsel %vm416, %v352, %v480
      %v545 = vsel %vm417, %v353, %v481
      %v546 = vsel %vm418, %v354, %v482
      %v547 = vsel %vm419, %v355, %v483
      %v548 = vsel %vm420, %v356, %v484
      %v549 = vsel %vm421, %v357, %v485
      %v550 = vsel %vm422, %v358, %v486
      %v551 = vsel %vm423, %v359, %v487
      %v552 = vsel %vm424, %v360, %v488
      %v553 = vsel %vm425, %v361, %v489
      %v554 = vsel %vm426, %v362, %v490
      %v555 = vsel %vm427, %v363, %v491
      %v556 = vsel %vm428, %v364, %v492
      %v557 = vsel %vm429, %v365, %v493
      %v558 = vsel %vm430, %v366, %v494
      %v559 = vsel %vm431, %v367, %v495
      %v560 = vsel %vm432, %v368, %v496
      %v561 = vsel %vm433, %v369, %v497
      %v562 = vsel %vm434, %v370, %v498
      %v563 = vsel %vm435, %v371, %v499
      %v564 = vsel %vm436, %v372, %v500
      %v565 = vsel %vm437, %v373, %v501
      %vm566 = vcmask 261120
      %567 = vst.msk [vmem:[%s172] sm:$0xff] %vm566, %v502
      %568 = vst.msk [vmem:[%s172 + $0x8] sm:$0xff] %vm566, %v503
      %569 = vst.msk [vmem:[%s172 + $0x10] sm:$0xff] %vm566, %v504
      %570 = vst.msk [vmem:[%s172 + $0x18] sm:$0xff] %vm566, %v505
      %571 = vst.msk [vmem:[%s172 + $0x20] sm:$0xff] %vm566, %v506
      %572 = vst.msk [vmem:[%s172 + $0x28] sm:$0xff] %vm566, %v507
      %573 = vst.msk [vmem:[%s172 + $0x30] sm:$0xff] %vm566, %v508
      %574 = vst.msk [vmem:[%s172 + $0x38] sm:$0xff] %vm566, %v509
      %575 = vst.msk [vmem:[%s172 + $0x40] sm:$0xff] %vm566, %v510
      %576 = vst.msk [vmem:[%s172 + $0x48] sm:$0xff] %vm566, %v511
      %577 = vst.msk [vmem:[%s172 + $0x50] sm:$0xff] %vm566, %v512
      %578 = vst.msk [vmem:[%s172 + $0x58] sm:$0xff] %vm566, %v513
      %579 = vst.msk [vmem:[%s172 + $0x60] sm:$0xff] %vm566, %v514
      %580 = vst.msk [vmem:[%s172 + $0x68] sm:$0xff] %vm566, %v515
      %581 = vst.msk [vmem:[%s172 + $0x70] sm:$0xff] %vm566, %v516
      %582 = vst.msk [vmem:[%s172 + $0x78] sm:$0xff] %vm566, %v517
      %583 = vst.msk [vmem:[%s172 + $0x80] sm:$0xff] %vm566, %v518
      %584 = vst.msk [vmem:[%s172 + $0x88] sm:$0xff] %vm566, %v519
      %585 = vst.msk [vmem:[%s172 + $0x90] sm:$0xff] %vm566, %v520
      %586 = vst.msk [vmem:[%s172 + $0x98] sm:$0xff] %vm566, %v521
      %587 = vst.msk [vmem:[%s172 + $0xa0] sm:$0xff] %vm566, %v522
      %588 = vst.msk [vmem:[%s172 + $0xa8] sm:$0xff] %vm566, %v523
      %589 = vst.msk [vmem:[%s172 + $0xb0] sm:$0xff] %vm566, %v524
      %590 = vst.msk [vmem:[%s172 + $0xb8] sm:$0xff] %vm566, %v525
      %591 = vst.msk [vmem:[%s172 + $0xc0] sm:$0xff] %vm566, %v526
      %592 = vst.msk [vmem:[%s172 + $0xc8] sm:$0xff] %vm566, %v527
      %593 = vst.msk [vmem:[%s172 + $0xd0] sm:$0xff] %vm566, %v528
      %594 = vst.msk [vmem:[%s172 + $0xd8] sm:$0xff] %vm566, %v529
      %595 = vst.msk [vmem:[%s172 + $0xe0] sm:$0xff] %vm566, %v530
      %596 = vst.msk [vmem:[%s172 + $0xe8] sm:$0xff] %vm566, %v531
      %597 = vst.msk [vmem:[%s172 + $0xf0] sm:$0xff] %vm566, %v532
      %598 = vst.msk [vmem:[%s172 + $0xf8] sm:$0xff] %vm566, %v533
      %599 = vst.msk [vmem:[%s172 + $0x100] sm:$0xff] %vm566, %v534
      %600 = vst.msk [vmem:[%s172 + $0x108] sm:$0xff] %vm566, %v535
      %601 = vst.msk [vmem:[%s172 + $0x110] sm:$0xff] %vm566, %v536
      %602 = vst.msk [vmem:[%s172 + $0x118] sm:$0xff] %vm566, %v537
      %603 = vst.msk [vmem:[%s172 + $0x120] sm:$0xff] %vm566, %v538
      %604 = vst.msk [vmem:[%s172 + $0x128] sm:$0xff] %vm566, %v539
      %605 = vst.msk [vmem:[%s172 + $0x130] sm:$0xff] %vm566, %v540
      %606 = vst.msk [vmem:[%s172 + $0x138] sm:$0xff] %vm566, %v541
      %607 = vst.msk [vmem:[%s172 + $0x140] sm:$0xff] %vm566, %v542
      %608 = vst.msk [vmem:[%s172 + $0x148] sm:$0xff] %vm566, %v543
      %609 = vst.msk [vmem:[%s172 + $0x150] sm:$0xff] %vm566, %v544
      %610 = vst.msk [vmem:[%s172 + $0x158] sm:$0xff] %vm566, %v545
      %611 = vst.msk [vmem:[%s172 + $0x160] sm:$0xff] %vm566, %v546
      %612 = vst.msk [vmem:[%s172 + $0x168] sm:$0xff] %vm566, %v547
      %613 = vst.msk [vmem:[%s172 + $0x170] sm:$0xff] %vm566, %v548
      %614 = vst.msk [vmem:[%s172 + $0x178] sm:$0xff] %vm566, %v549
      %615 = vst.msk [vmem:[%s172 + $0x180] sm:$0xff] %vm566, %v550
      %616 = vst.msk [vmem:[%s172 + $0x188] sm:$0xff] %vm566, %v551
      %617 = vst.msk [vmem:[%s172 + $0x190] sm:$0xff] %vm566, %v552
      %618 = vst.msk [vmem:[%s172 + $0x198] sm:$0xff] %vm566, %v553
      %619 = vst.msk [vmem:[%s172 + $0x1a0] sm:$0xff] %vm566, %v554
      %620 = vst.msk [vmem:[%s172 + $0x1a8] sm:$0xff] %vm566, %v555
      %621 = vst.msk [vmem:[%s172 + $0x1b0] sm:$0xff] %vm566, %v556
      %622 = vst.msk [vmem:[%s172 + $0x1b8] sm:$0xff] %vm566, %v557
      %623 = vst.msk [vmem:[%s172 + $0x1c0] sm:$0xff] %vm566, %v558
      %624 = vst.msk [vmem:[%s172 + $0x1c8] sm:$0xff] %vm566, %v559
      %625 = vst.msk [vmem:[%s172 + $0x1d0] sm:$0xff] %vm566, %v560
      %626 = vst.msk [vmem:[%s172 + $0x1d8] sm:$0xff] %vm566, %v561
      %627 = vst.msk [vmem:[%s172 + $0x1e0] sm:$0xff] %vm566, %v562
      %628 = vst.msk [vmem:[%s172 + $0x1e8] sm:$0xff] %vm566, %v563
      %629 = vst.msk [vmem:[%s172 + $0x1f0] sm:$0xff] %vm566, %v564
      %630 = vst.msk [vmem:[%s172 + $0x1f8] sm:$0xff] %vm566, %v565
      %s631 = smul.u32 64, %s14
      %p632 = scmp.lt.s32.totalorder %s631, 1023
      %s633 = scalar_select %p632, %s631, 1023
      %s634 = smul.addr %s633, 8
      %s635 = scalar_lea.vmem %s3, %s634
      // Predicated region
      $region33: #{_conv_layer.3} parent=31 // pred_check
        %p636 = pneg %p100
      $region34: #{_conv_layer.3} parent=31 // pred_check_branch
        %638 = sbr.rel (%p636) target = $region36
      $region35: #{_conv_layer.3} parent=31 // pred_region
        %s639 = smul.u32 64, %s14
      $region36: #{_conv_layer.3} parent=31 // pred_fallthru
        _
    $region32: #{_conv_layer.3} parent=5 // pred_fallthru
      _
    %p640 = scmp.le.s32.totalorder 2, %s9
    // Predicated region
    $region37: #{_conv_layer.3} parent=5 // pred_check
      %p641 = pneg %p640
    $region38: #{_conv_layer.3} parent=5 // pred_check_branch
      %643 = sbr.rel (%p641) target = $region40
    $region39: #{_conv_layer.3} parent=5 // pred_region
      %s644 = ssub.s32 %s9, 2
      // Predicated region
      $region41: #{_conv_layer.3} parent=39 // pred_check
        %p645 = pneg %p106
      $region42: #{_conv_layer.3} parent=39 // pred_check_branch
        %647 = sbr.rel (%p645) target = $region44
      $region43: #{_conv_layer.3} parent=39 // pred_region
        %s648 = smul.u32 64, %s15
        %p649 = scmp.lt.s32.totalorder %s648, 1023
        %s650 = scalar_select %p649, %s648, 1023
        %s651 = smul.addr %s650, 8
        %s652 = scalar_lea.vmem %s3, %s651
      $region44: #{_conv_layer.3} parent=39 // pred_fallthru
        _
    $region40: #{_conv_layer.3} parent=5 // pred_fallthru
      _
  $region6: #{_conv_layer.3} parent=0 // loop_footer
    %s13 = sadd.s32 1, %s9
  $region7: #{_conv_layer.3} parent=0 // loop_footer_branch
    %8 = sbr.rel target = $region3
  $region8: #{_conv_layer.3} parent=0 // loop_exit
    _

</llo_original>
